<compile_context>
chip_gen: v7x
topology: tpu7x:2x2x1
jax: 0.10.0
libtpu: 0.0.40
codegen_flags: <defaults>
</compile_context>

<pallas_src>
import functools
import math

import jax
import jax.numpy as jnp
from jax.experimental import pallas as pl
from jax.experimental.pallas import tpu as pltpu


# ---------------------------------------------------------------------------
# Fused kernel:  kx projection (once)  +  qx projection  +  qx @ kx^T
#                +  square  +  row-wise L1 normalize
# ---------------------------------------------------------------------------
def _feat2graph_kernel(n_valid, n_pad, tm, eps,
                       x_ref, wq_ref, bq_ref, wk_ref, bk_ref,
                       o_ref, kx_ref):
    # Stage 1 (runs once, at grid step 0): kx = x @ Wk^T + bk into a persistent
    # VMEM scratch.  The grid axis is marked "arbitrary", so this write is
    # visible to every subsequent step (and is not split across TensorCores).
    @pl.when(pl.program_id(0) == 0)
    def _():
        kx_ref[...] = (
            jnp.dot(x_ref[...], wk_ref[...], preferred_element_type=jnp.float32)
            + bk_ref[...]
        )

    i = pl.program_id(0)
    row0 = pl.multiple_of(i * tm, tm)
    x_tile = x_ref[pl.ds(row0, tm), :]                         # (tm, F)

    # qx row tile on the MXU, f32 accumulation.
    qx = (
        jnp.dot(x_tile, wq_ref[...], preferred_element_type=jnp.float32)
        + bq_ref[...]
    )                                                          # (tm, F)

    # qx @ kx^T with NO in-kernel transpose: contract the last dim of both
    # operands (canonical trans_b form for the MXU).
    dot = jax.lax.dot_general(
        qx, kx_ref[...],
        dimension_numbers=(((1,), (1,)), ((), ())),
        preferred_element_type=jnp.float32,
    )                                                          # (tm, n_pad)

    sq = dot * dot
    if n_pad != n_valid:
        # Padded kx rows come from zero-padded x rows (they equal bk), so mask
        # the padded columns out of the L1 row sums.  Static (trace-time) branch.
        col = jax.lax.broadcasted_iota(jnp.int32, sq.shape, 1)
        sq = jnp.where(col < n_valid, sq, 0.0)

    # Normalize in place: write the squares, reduce the row L1 norm, then scale
    # by a (tm, 1) reciprocal broadcast over the lanes (tm EUP reciprocals +
    # a VPU multiply instead of a full (tm, N) divide).  Entries are squares,
    # so |.| is a no-op; eps clamp matches F.normalize.
    o_ref[...] = sq
    denom = jnp.maximum(jnp.sum(o_ref[...], axis=-1, keepdims=True), eps)
    o_ref[...] = o_ref[...] * pl.reciprocal(denom, approx=False)


# ---------------------------------------------------------------------------
# Wrapper
# ---------------------------------------------------------------------------
def _round_up(v, m):
    return ((v + m - 1) // m) * m


def _pick_row_tile(n_pad, preferred):
    """Largest tile in {preferred, 512, 256, 128} dividing n_pad; never < 128."""
    preferred = max(int(preferred), 128)
    for t in (preferred, 512, 256, 128):
        if t <= n_pad and n_pad % t == 0:
            return t
    return 128  # unreachable: n_pad is always a multiple of 128


def feat2graph(x, wq, bq, wk, bk, *, tm=256):
    """Pallas implementation of Feat2Graph.forward for 2-D x of shape (N, F).

    wq, wk follow the torch nn.Linear convention (shape (F_out, F_in),
    y = x @ W^T + b).  Returns (x, adj) exactly like the PyTorch module.
    """
    # TODO(synk): leading batch dims (x.ndim > 2) can be handled by jax.vmap
    # over this wrapper; the kernel below assumes 2-D x.
    n, f = x.shape
    assert wq.shape == (f, f) and wk.shape == (f, f)
    assert bq.shape == (f,) and bk.shape == (f,)

    # Pad the node axis to a multiple of 128 (tiles stay >= 128 rows, output
    # stores stay unmasked/lane-dense); padded columns are masked in-kernel.
    n_pad = max(_round_up(n, 128), 128)
    tm = _pick_row_tile(n_pad, tm)
    # Keep the double-buffered (tm, n_pad) f32 output tile modest so the plan
    # also fits v7x's 64 MiB VMEM alongside the resident x / kx.
    while tm > 128 and 2 * tm * n_pad * 4 > (24 << 20):
        tm //= 2
    n_tiles = n_pad // tm

    x_p = x if n_pad == n else jnp.pad(x, ((0, n_pad - n), (0, 0)))
    wq_t = wq.T                      # (F_in, F_out) so the kernel does x @ W
    wk_t = wk.T
    bq2d = bq.reshape(1, f)
    bk2d = bk.reshape(1, f)

    # Explicit VMEM budget: resident x + kx scratch + weights/biases +
    # double-buffered output tile, with ~50% headroom (floor at 32 MiB default).
    vmem_bytes = 4 * (2 * n_pad * f + 2 * f * f + 2 * f + 2 * tm * n_pad)
    vmem_limit = int(min(128 << 20, max(32 << 20, 1.5 * vmem_bytes)))
    # TODO(synk): for very large N (v7x's 64 MiB VMEM), tile the kx / output
    # column axis with a two-pass or online (flash-style) L1 normalization
    # instead of keeping full kx and full output rows resident.

    flops = 2 * n_pad * f * f                                   # kx (once)
    flops += n_tiles * (2 * tm * f * f + 2 * tm * n_pad * f + 4 * tm * n_pad)
    cost = pl.CostEstimate(
        flops=int(flops),
        transcendentals=0,
        bytes_accessed=int(4 * (n_pad * f + 2 * f * f + 2 * f + n_pad * n_pad)),
    )

    kernel = functools.partial(_feat2graph_kernel, n, n_pad, tm, 1e-12)

    adj = pl.pallas_call(
        kernel,
        out_shape=jax.ShapeDtypeStruct((n_pad, n_pad), jnp.float32),
        grid_spec=pltpu.PrefetchScalarGridSpec(
            num_scalar_prefetch=0,
            grid=(n_tiles,),
            in_specs=[
                # Grid-invariant operands: whole array resident in VMEM once
                # (single buffer, no per-step DMA).
                pl.BlockSpec(memory_space=pltpu.MemorySpace.VMEM),  # x (padded)
                pl.BlockSpec(memory_space=pltpu.MemorySpace.VMEM),  # Wq^T
                pl.BlockSpec(memory_space=pltpu.MemorySpace.VMEM),  # bq
                pl.BlockSpec(memory_space=pltpu.MemorySpace.VMEM),  # Wk^T
                pl.BlockSpec(memory_space=pltpu.MemorySpace.VMEM),  # bk
            ],
            # Only the lane-dense (tm, n_pad) output row tile is pipelined.
            out_specs=pl.BlockSpec((tm, n_pad), lambda i: (i, 0)),
            # kx scratch: computed once at step 0, persists across grid steps.
            scratch_shapes=[pltpu.VMEM((n_pad, f), jnp.float32)],
        ),
        compiler_params=pltpu.CompilerParams(
            # "arbitrary" (not "parallel"): the step-0 kx init must be visible
            # to every later step; a 'parallel' axis on a 2-TC part would leave
            # the second core reading uninitialized kx.
            dimension_semantics=("arbitrary",),
            vmem_limit_bytes=vmem_limit,
        ),
        cost_estimate=cost,
    )(x_p, wq_t, bq2d, wk_t, bk2d)

    if n_pad != n:
        adj = adj[:n, :n]
    return x, adj


# ---------------------------------------------------------------------------
# Demo / self-test
# ---------------------------------------------------------------------------
def _reference(x, wq, bq, wk, bk):
    hi = jax.lax.Precision.HIGHEST
    qx = jnp.dot(x, wq.T, precision=hi) + bq
    kx = jnp.dot(x, wk.T, precision=hi) + bk
    dot = jnp.dot(qx, kx.T, precision=hi)
    sq = dot * dot
    return sq / jnp.maximum(jnp.sum(sq, axis=-1, keepdims=True), 1e-12)


def _run_case(n, f, seed):
    key = jax.random.PRNGKey(seed)
    k_x, k_wq, k_bq, k_wk, k_bk = jax.random.split(key, 5)
    x = jax.random.normal(k_x, (n, f), dtype=jnp.float32)

    # nn.Linear default init: U(-1/sqrt(fan_in), 1/sqrt(fan_in)).
    bound = 1.0 / math.sqrt(f)
    wq = jax.random.uniform(k_wq, (f, f), minval=-bound, maxval=bound, dtype=jnp.float32)
    bq = jax.random.uniform(k_bq, (f,), minval=-bound, maxval=bound, dtype=jnp.float32)
    wk = jax.random.uniform(k_wk, (f, f), minval=-bound, maxval=bound, dtype=jnp.float32)
    bk = jax.random.uniform(k_bk, (f,), minval=-bound, maxval=bound, dtype=jnp.float32)

    x_out, adj = feat2graph(x, wq, bq, wk, bk)
    adj = jax.block_until_ready(adj)

    adj_ref = _reference(x, wq, bq, wk, bk)
    assert x_out.shape == (n, f) and adj.shape == (n, n)
    assert bool(jnp.all(x_out == x)), "x passthrough mismatch"
    assert bool(jnp.allclose(adj, adj_ref, atol=1e-4, rtol=1e-2)), "adj mismatch vs reference"
    assert bool(jnp.allclose(jnp.sum(adj, axis=-1), 1.0, atol=1e-3)), "rows not L1-normalized"


if __name__ == "__main__":
    # Small Feat2Graph problem: N "nodes" (e.g. RoI features) with num_feats F.
    _run_case(256, 128, seed=0)   # aligned shape: single fused grid step
    _run_case(200, 128, seed=1)   # non-multiple-of-128 N: exercises padding + column masking
    print("KERNEL_OK")
</pallas_src>

<mosaic_0001>
module attributes {stable_mosaic.version = 11 : i64} {
  func.func @_feat2graph_kernel(%arg0: i32, %arg1: memref<256x128xf32, #tpu.memory_space<vmem>>, %arg2: memref<128x128xf32, #tpu.memory_space<vmem>>, %arg3: memref<1x128xf32, #tpu.memory_space<vmem>>, %arg4: memref<128x128xf32, #tpu.memory_space<vmem>>, %arg5: memref<1x128xf32, #tpu.memory_space<vmem>>, %arg6: memref<256x256xf32, #tpu.memory_space<vmem>>, %arg7: memref<256x128xf32, #tpu.memory_space<vmem>>) attributes {dimension_semantics = [#tpu.dimension_semantics<arbitrary>], iteration_bounds = array<i64: 1>, scalar_prefetch = 0 : i64, scratch_operands = 1 : i64, tpu.core_type = #tpu.core_type<tc>, window_params = [{pipeline_mode = #tpu.pipeline_mode<synchronous>, transform_indices = @transform_0, window_bounds = array<i64: 256, 128>}, {pipeline_mode = #tpu.pipeline_mode<synchronous>, transform_indices = @transform_1, window_bounds = array<i64: 128, 128>}, {pipeline_mode = #tpu.pipeline_mode<synchronous>, transform_indices = @transform_2, window_bounds = array<i64: 1, 128>}, {pipeline_mode = #tpu.pipeline_mode<synchronous>, transform_indices = @transform_3, window_bounds = array<i64: 128, 128>}, {pipeline_mode = #tpu.pipeline_mode<synchronous>, transform_indices = @transform_4, window_bounds = array<i64: 1, 128>}, {transform_indices = @transform_5, window_bounds = array<i64: 256, 256>}]} {
    %c0_i32 = arith.constant 0 : i32
    %0 = arith.cmpi eq, %arg0, %c0_i32 : i32
    %1 = arith.extui %0 : i1 to i32
    %c0_i32_0 = arith.constant 0 : i32
    %2 = arith.cmpi ne, %1, %c0_i32_0 : i32
    scf.if %2 {
      %c0_18 = arith.constant 0 : index
      %c0_19 = arith.constant 0 : index
      %26 = vector.load %arg1[%c0_18, %c0_19] : memref<256x128xf32, #tpu.memory_space<vmem>>, vector<256x128xf32>
      %c0_20 = arith.constant 0 : index
      %c0_21 = arith.constant 0 : index
      %27 = vector.load %arg4[%c0_20, %c0_21] : memref<128x128xf32, #tpu.memory_space<vmem>>, vector<128x128xf32>
      %cst_22 = arith.constant dense<0.000000e+00> : vector<256x128xf32>
      %28 = tpu.matmul %26, %27, %cst_22 {dimension_numbers = #tpu.dot_dimension_numbers<[1], [0], [0], [1], [0, 0, 1, 1], [], []>} : vector<256x128xf32>, vector<128x128xf32>, vector<256x128xf32> -> vector<256x128xf32>
      %c0_23 = arith.constant 0 : index
      %c0_24 = arith.constant 0 : index
      %29 = vector.load %arg5[%c0_23, %c0_24] : memref<1x128xf32, #tpu.memory_space<vmem>>, vector<1x128xf32>
      %30 = vector.broadcast %29 : vector<1x128xf32> to vector<256x128xf32>
      %31 = arith.addf %28, %30 : vector<256x128xf32>
      %c0_25 = arith.constant 0 : index
      %c0_26 = arith.constant 0 : index
      %32 = vector.load %arg7[%c0_25, %c0_26] : memref<256x128xf32, #tpu.memory_space<vmem>>, vector<256x128xf32>
      tpu.vector_store %arg7[%c0_25, %c0_26], %31 {strides = array<i32>} : memref<256x128xf32, #tpu.memory_space<vmem>>, vector<256x128xf32>,
    } else {
    }
    %c256_i32 = arith.constant 256 : i32
    %3 = arith.muli %arg0, %c256_i32 : i32
    %4 = tpu.assume_multiple %3, 256 : i32
    %5 = arith.index_cast %4 : i32 to index
    %c0 = arith.constant 0 : index
    %6 = vector.load %arg1[%5, %c0] : memref<256x128xf32, #tpu.memory_space<vmem>>, vector<256x128xf32>
    %c0_1 = arith.constant 0 : index
    %c0_2 = arith.constant 0 : index
    %7 = vector.load %arg2[%c0_1, %c0_2] : memref<128x128xf32, #tpu.memory_space<vmem>>, vector<128x128xf32>
    %cst = arith.constant dense<0.000000e+00> : vector<256x128xf32>
    %8 = tpu.matmul %6, %7, %cst {dimension_numbers = #tpu.dot_dimension_numbers<[1], [0], [0], [1], [0, 0, 1, 1], [], []>} : vector<256x128xf32>, vector<128x128xf32>, vector<256x128xf32> -> vector<256x128xf32>
    %c0_3 = arith.constant 0 : index
    %c0_4 = arith.constant 0 : index
    %9 = vector.load %arg3[%c0_3, %c0_4] : memref<1x128xf32, #tpu.memory_space<vmem>>, vector<1x128xf32>
    %10 = vector.broadcast %9 : vector<1x128xf32> to vector<256x128xf32>
    %11 = arith.addf %8, %10 : vector<256x128xf32>
    %c0_5 = arith.constant 0 : index
    %c0_6 = arith.constant 0 : index
    %12 = vector.load %arg7[%c0_5, %c0_6] : memref<256x128xf32, #tpu.memory_space<vmem>>, vector<256x128xf32>
    %cst_7 = arith.constant dense<0.000000e+00> : vector<256x256xf32>
    %13 = tpu.matmul %11, %12, %cst_7 {dimension_numbers = #tpu.dot_dimension_numbers<[1], [1], [0], [0], [0, 0, 1, 0], [], []>} : vector<256x128xf32>, vector<256x128xf32>, vector<256x256xf32> -> vector<256x256xf32>
    %14 = arith.mulf %13, %13 : vector<256x256xf32>
    %c0_8 = arith.constant 0 : index
    %c0_9 = arith.constant 0 : index
    %15 = vector.load %arg6[%c0_8, %c0_9] : memref<256x256xf32, #tpu.memory_space<vmem>>, vector<256x256xf32>
    tpu.vector_store %arg6[%c0_8, %c0_9], %14 {strides = array<i32>} : memref<256x256xf32, #tpu.memory_space<vmem>>, vector<256x256xf32>,
    %c0_10 = arith.constant 0 : index
    %c0_11 = arith.constant 0 : index
    %16 = vector.load %arg6[%c0_10, %c0_11] : memref<256x256xf32, #tpu.memory_space<vmem>>, vector<256x256xf32>
    %cst_12 = arith.constant dense<0.000000e+00> : vector<256xf32>
    %17 = vector.multi_reduction <add>, %16, %cst_12 [1] : vector<256x256xf32> to vector<256xf32>
    %18 = vector.shape_cast %17 : vector<256xf32> to vector<256x1xf32>
    %cst_13 = arith.constant 9.99999996E-13 : f32
    %19 = vector.broadcast %cst_13 : f32 to vector<256x1xf32>
    %20 = arith.maximumf %18, %19 : vector<256x1xf32>
    %c0_14 = arith.constant 0 : index
    %c0_15 = arith.constant 0 : index
    %21 = vector.load %arg6[%c0_14, %c0_15] : memref<256x256xf32, #tpu.memory_space<vmem>>, vector<256x256xf32>
    %22 = tpu.reciprocal %20 : vector<256x1xf32> -> vector<256x1xf32>
    %23 = vector.broadcast %22 : vector<256x1xf32> to vector<256x256xf32>
    %24 = arith.mulf %21, %23 : vector<256x256xf32>
    %c0_16 = arith.constant 0 : index
    %c0_17 = arith.constant 0 : index
    %25 = vector.load %arg6[%c0_16, %c0_17] : memref<256x256xf32, #tpu.memory_space<vmem>>, vector<256x256xf32>
    tpu.vector_store %arg6[%c0_16, %c0_17], %24 {strides = array<i32>} : memref<256x256xf32, #tpu.memory_space<vmem>>, vector<256x256xf32>,
    return
  }
  func.func @transform_0(%arg0: i32) -> (i32, i32) {
    %c0_i32 = arith.constant 0 : i32
    %c0_i32_0 = arith.constant 0 : i32
    %c0_i32_1 = arith.constant 0 : i32
    return %c0_i32, %c0_i32_0 : i32, i32
  }
  func.func @transform_1(%arg0: i32) -> (i32, i32) {
    %c0_i32 = arith.constant 0 : i32
    %c0_i32_0 = arith.constant 0 : i32
    %c0_i32_1 = arith.constant 0 : i32
    return %c0_i32, %c0_i32_0 : i32, i32
  }
  func.func @transform_2(%arg0: i32) -> (i32, i32) {
    %c0_i32 = arith.constant 0 : i32
    %c0_i32_0 = arith.constant 0 : i32
    %c0_i32_1 = arith.constant 0 : i32
    return %c0_i32, %c0_i32_0 : i32, i32
  }
  func.func @transform_3(%arg0: i32) -> (i32, i32) {
    %c0_i32 = arith.constant 0 : i32
    %c0_i32_0 = arith.constant 0 : i32
    %c0_i32_1 = arith.constant 0 : i32
    return %c0_i32, %c0_i32_0 : i32, i32
  }
  func.func @transform_4(%arg0: i32) -> (i32, i32) {
    %c0_i32 = arith.constant 0 : i32
    %c0_i32_0 = arith.constant 0 : i32
    %c0_i32_1 = arith.constant 0 : i32
    return %c0_i32, %c0_i32_0 : i32, i32
  }
  func.func @transform_5(%arg0: i32) -> (i32, i32) {
    %c0_i32 = arith.constant 0 : i32
    %c0_i32_0 = arith.constant 0 : i32
    return %arg0, %c0_i32 : i32, i32
  }
}

</mosaic_0001>

<llo_original>
// kernel: tpu_custom_call.1
$region0: #{tpu_custom_call.1}
  #allocation0 [shape = 'u32[]', space=smem, size = 0x4, offset = 0x4, fixed_abs, tag = 'smem constant byte address 0x4 - core index']
  #allocation1 [shape = 'u32[144,128]{1,0:T(1,128)}', space=vmem, size = 0x12000, scoped, tag = 'internal scratch']
  #allocation2 [shape = 'f32[256,128]{1,0:T(8,128)}', space=vmem, size = 0x20000, scoped, tag = 'scratch operand']
  %s0 = inlined_call_operand.hbm [shape: f32[256,128], index: 0, kind: input, shape index: {}]
  %s1 = inlined_call_operand.hbm [shape: f32[128,128], index: 1, kind: input, shape index: {}]
  %s2 = inlined_call_operand.vmem [shape: f32[1,128], index: 2, kind: input, shape index: {}]
  %s3 = inlined_call_operand.hbm [shape: f32[128,128], index: 3, kind: input, shape index: {}]
  %s4 = inlined_call_operand.vmem [shape: f32[1,128], index: 4, kind: input, shape index: {}]
  %s5 = inlined_call_operand.hbm [shape: f32[256,256], index: 5, kind: output, shape index: {}]
  %s6 = sld [smem:[#allocation0]]
  $region46: #{tpu_custom_call.1} parent=0
    _
  %s8 = ssub.s32 1, %s6
  %s9 = scalar_select 0, %s8, %s6
  $region1: #{tpu_custom_call.1} parent=0
    #allocation3 [shape = 'u8[131072]{0}', space=vmem, size = 0x20000, scoped, tag = 'input window, operand 0, single buffered']
    #allocation4 [shape = 's32[1]{0}', space=sflag, size = 0x4, scoped, tag = 'scoped memory for tpu_custom_call.1']
    #allocation5 [shape = 's32[1]{0}', space=sflag, size = 0x4, scoped, tag = 'scoped memory for tpu_custom_call.1']
    #allocation6 [shape = 'u8[65536]{0}', space=vmem, size = 0x10000, scoped, tag = 'input window, operand 1, single buffered']
    #allocation7 [shape = 's32[1]{0}', space=sflag, size = 0x4, scoped, tag = 'scoped memory for tpu_custom_call.1']
    #allocation8 [shape = 'u8[65536]{0}', space=vmem, size = 0x10000, scoped, tag = 'input window, operand 3, single buffered']
    #allocation9 [shape = 'u8[262144]{0}', space=vmem, size = 0x40000, scoped, tag = 'output window, operand 0, single buffered']
    %10 = vsyncpa [#allocation4], 0
    %11 = vsyncpa [#allocation7], 0
    %12 = vsyncpa [#allocation5], 0
    // Predicated region
    $region2: #{tpu_custom_call.1} parent=1 // pred_check
      _
    $region3: #{tpu_custom_call.1} parent=1 // pred_check_branch
      %14 = sbr.rel (0) target = $region5
    $region4: #{tpu_custom_call.1} parent=1 // pred_region
      %s16 = ssub.s32 4096, 4096
      %17 = vsyncadd [#allocation4], %s16
      %s18 = sshll.u32 [#allocation3], 4
      %s19 = int_to_ptr.vmem [resolvable:$true] %s18
      %24 = dma.hbm_to_vmem [thread:$0]  %s0, 4096, %s19, [#allocation4], 128, 128, 8
    $region5: #{tpu_custom_call.1} parent=1 // pred_fallthru
      _
    // Predicated region
    $region6: #{tpu_custom_call.1} parent=1 // pred_check
      _
    $region7: #{tpu_custom_call.1} parent=1 // pred_check_branch
      %26 = sbr.rel (0) target = $region9
    $region8: #{tpu_custom_call.1} parent=1 // pred_region
      %s28 = ssub.s32 2048, 2048
      %29 = vsyncadd [#allocation7], %s28
      %s30 = sshll.u32 [#allocation6], 4
      %s31 = int_to_ptr.vmem [resolvable:$true] %s30
      %36 = dma.hbm_to_vmem [thread:$0]  %s1, 2048, %s31, [#allocation7], 128, 128, 8
    $region9: #{tpu_custom_call.1} parent=1 // pred_fallthru
      _
    // Predicated region
    $region10: #{tpu_custom_call.1} parent=1 // pred_check
      _
    $region11: #{tpu_custom_call.1} parent=1 // pred_check_branch
      %38 = sbr.rel (0) target = $region13
    $region12: #{tpu_custom_call.1} parent=1 // pred_region
      _
    $region13: #{tpu_custom_call.1} parent=1 // pred_fallthru
      _
    // Predicated region
    $region14: #{tpu_custom_call.1} parent=1 // pred_check
      _
    $region15: #{tpu_custom_call.1} parent=1 // pred_check_branch
      %40 = sbr.rel (0) target = $region17
    $region16: #{tpu_custom_call.1} parent=1 // pred_region
      %s42 = ssub.s32 2048, 2048
      %43 = vsyncadd [#allocation7], %s42
      %s44 = sshll.u32 [#allocation8], 4
      %s45 = int_to_ptr.vmem [resolvable:$true] %s44
      %50 = dma.hbm_to_vmem [thread:$0]  %s3, 2048, %s45, [#allocation7], 128, 128, 8
    $region17: #{tpu_custom_call.1} parent=1 // pred_fallthru
      _
    // Predicated region
    $region18: #{tpu_custom_call.1} parent=1 // pred_check
      _
    $region19: #{tpu_custom_call.1} parent=1 // pred_check_branch
      %52 = sbr.rel (0) target = $region21
    $region20: #{tpu_custom_call.1} parent=1 // pred_region
      _
    $region21: #{tpu_custom_call.1} parent=1 // pred_fallthru
      _
    // Predicated region
    $region22: #{tpu_custom_call.1} parent=1 // pred_check
      _
    $region23: #{tpu_custom_call.1} parent=1 // pred_check_branch
      %54 = sbr.rel (0) target = $region25
    $region24: #{tpu_custom_call.1} parent=1 // pred_region
      %55 = dma.done [#allocation4], 4096
    $region25: #{tpu_custom_call.1} parent=1 // pred_fallthru
      _
    // Predicated region
    $region26: #{tpu_custom_call.1} parent=1 // pred_check
      _
    $region27: #{tpu_custom_call.1} parent=1 // pred_check_branch
      %57 = sbr.rel (0) target = $region29
    $region28: #{tpu_custom_call.1} parent=1 // pred_region
      %58 = dma.done [#allocation7], 2048
    $region29: #{tpu_custom_call.1} parent=1 // pred_fallthru
      _
    // Predicated region
    $region30: #{tpu_custom_call.1} parent=1 // pred_check
      _
    $region31: #{tpu_custom_call.1} parent=1 // pred_check_branch
      %60 = sbr.rel (0) target = $region33
    $region32: #{tpu_custom_call.1} parent=1 // pred_region
      %61 = dma.done [#allocation7], 2048
    $region33: #{tpu_custom_call.1} parent=1 // pred_fallthru
      _
    %p62 = scmp.eq.s32.totalorder 0, 0
    // Predicated region
    $region34: #{tpu_custom_call.1} parent=1 // pred_check
      %p63 = pneg %p62
    $region35: #{tpu_custom_call.1} parent=1 // pred_check_branch
      %65 = sbr.rel (%p63) target = $region37
    $region36: #{tpu_custom_call.1} parent=1 // pred_region
      %v66 = vld [vmem:[#allocation3] sm:$0xff]
      %v67 = vld [vmem:[#allocation3 + $0x8] sm:$0xff]
      %v68 = vld [vmem:[#allocation3 + $0x10] sm:$0xff]
      %v69 = vld [vmem:[#allocation3 + $0x18] sm:$0xff]
      %v70 = vld [vmem:[#allocation3 + $0x20] sm:$0xff]
      %v71 = vld [vmem:[#allocation3 + $0x28] sm:$0xff]
      %v72 = vld [vmem:[#allocation3 + $0x30] sm:$0xff]
      %v73 = vld [vmem:[#allocation3 + $0x38] sm:$0xff]
      %v74 = vld [vmem:[#allocation3 + $0x40] sm:$0xff]
      %v75 = vld [vmem:[#allocation3 + $0x48] sm:$0xff]
      %v76 = vld [vmem:[#allocation3 + $0x50] sm:$0xff]
      %v77 = vld [vmem:[#allocation3 + $0x58] sm:$0xff]
      %v78 = vld [vmem:[#allocation3 + $0x60] sm:$0xff]
      %v79 = vld [vmem:[#allocation3 + $0x68] sm:$0xff]
      %v80 = vld [vmem:[#allocation3 + $0x70] sm:$0xff]
      %v81 = vld [vmem:[#allocation3 + $0x78] sm:$0xff]
      %v82 = vld [vmem:[#allocation3 + $0x80] sm:$0xff]
      %v83 = vld [vmem:[#allocation3 + $0x88] sm:$0xff]
      %v84 = vld [vmem:[#allocation3 + $0x90] sm:$0xff]
      %v85 = vld [vmem:[#allocation3 + $0x98] sm:$0xff]
      %v86 = vld [vmem:[#allocation3 + $0xa0] sm:$0xff]
      %v87 = vld [vmem:[#allocation3 + $0xa8] sm:$0xff]
      %v88 = vld [vmem:[#allocation3 + $0xb0] sm:$0xff]
      %v89 = vld [vmem:[#allocation3 + $0xb8] sm:$0xff]
      %v90 = vld [vmem:[#allocation3 + $0xc0] sm:$0xff]
      %v91 = vld [vmem:[#allocation3 + $0xc8] sm:$0xff]
      %v92 = vld [vmem:[#allocation3 + $0xd0] sm:$0xff]
      %v93 = vld [vmem:[#allocation3 + $0xd8] sm:$0xff]
      %v94 = vld [vmem:[#allocation3 + $0xe0] sm:$0xff]
      %v95 = vld [vmem:[#allocation3 + $0xe8] sm:$0xff]
      %v96 = vld [vmem:[#allocation3 + $0xf0] sm:$0xff]
      %v97 = vld [vmem:[#allocation3 + $0xf8] sm:$0xff]
      %v98 = vld [vmem:[#allocation8] sm:$0xff]
      %v99 = vld [vmem:[#allocation8 + $0x8] sm:$0xff]
      %v100 = vld [vmem:[#allocation8 + $0x10] sm:$0xff]
      %v101 = vld [vmem:[#allocation8 + $0x18] sm:$0xff]
      %v102 = vld [vmem:[#allocation8 + $0x20] sm:$0xff]
      %v103 = vld [vmem:[#allocation8 + $0x28] sm:$0xff]
      %v104 = vld [vmem:[#allocation8 + $0x30] sm:$0xff]
      %v105 = vld [vmem:[#allocation8 + $0x38] sm:$0xff]
      %v106 = vld [vmem:[#allocation8 + $0x40] sm:$0xff]
      %v107 = vld [vmem:[#allocation8 + $0x48] sm:$0xff]
      %v108 = vld [vmem:[#allocation8 + $0x50] sm:$0xff]
      %v109 = vld [vmem:[#allocation8 + $0x58] sm:$0xff]
      %v110 = vld [vmem:[#allocation8 + $0x60] sm:$0xff]
      %v111 = vld [vmem:[#allocation8 + $0x68] sm:$0xff]
      %v112 = vld [vmem:[#allocation8 + $0x70] sm:$0xff]
      %v113 = vld [vmem:[#allocation8 + $0x78] sm:$0xff]
      %v114 = vld [vmem:[%s4] sm:$0x1]
      %v116 = vlaneseq
      %v117 = vshrl.u32 %v116, 7
      %v118 = vsub.s32 0, %v117
      %v119 = vrot.slane %v114, %v118
      %121 = vmatprep.subr.mxu0 0.0
      %122 = vmatpush1.msra.mxu0 %v98
      %123 = vmatprep.subr.mxu0 0.0
      %124 = vmatpush1.msra.mxu0 %v99
      %125 = vmatprep.subr.mxu0 0.0
      %126 = vmatpush1.msra.mxu0 %v100
      %127 = vmatprep.subr.mxu0 0.0
      %128 = vmatpush1.msra.mxu0 %v101
      %129 = vmatprep.subr.mxu0 0.0
      %130 = vmatpush1.msra.mxu0 %v102
      %131 = vmatprep.subr.mxu0 0.0
      %132 = vmatpush1.msra.mxu0 %v103
      %133 = vmatprep.subr.mxu0 0.0
      %134 = vmatpush1.msra.mxu0 %v104
      %135 = vmatprep.subr.mxu0 0.0
      %136 = vmatpush1.msra.mxu0 %v105
      %137 = vmatprep.subr.mxu0 0.0
      %138 = vmatpush1.msra.mxu0 %v106
      %139 = vmatprep.subr.mxu0 0.0
      %140 = vmatpush1.msra.mxu0 %v107
      %141 = vmatprep.subr.mxu0 0.0
      %142 = vmatpush1.msra.mxu0 %v108
      %143 = vmatprep.subr.mxu0 0.0
      %144 = vmatpush1.msra.mxu0 %v109
      %145 = vmatprep.subr.mxu0 0.0
      %146 = vmatpush1.msra.mxu0 %v110
      %147 = vmatprep.subr.mxu0 0.0
      %148 = vmatpush1.msra.mxu0 %v111
      %149 = vmatprep.subr.mxu0 0.0
      %150 = vmatpush1.msra.mxu0 %v112
      %151 = vmatprep.subr.mxu0 0.0
      %152 = vmatpush1.msra.mxu0 %v113
      %153 = vmatprep.subr.mxu0 0.0
      %154 = vmatpush1.msra.mxu0 0.0
      %155 = vmatprep.subr.mxu0 0.0
      %156 = vmatpush1.msra.mxu0 0.0
      %157 = vmatprep.subr.mxu0 0.0
      %158 = vmatpush1.msra.mxu0 0.0
      %159 = vmatprep.subr.mxu0 0.0
      %160 = vmatpush1.msra.mxu0 0.0
      %161 = vmatprep.subr.mxu0 0.0
      %162 = vmatpush1.msra.mxu0 0.0
      %163 = vmatprep.subr.mxu0 0.0
      %164 = vmatpush1.msra.mxu0 0.0
      %165 = vmatprep.subr.mxu0 0.0
      %166 = vmatpush1.msra.mxu0 0.0
      %167 = vmatprep.subr.mxu0 0.0
      %168 = vmatpush1.msra.mxu0 0.0
      %169 = vmatprep.subr.mxu0 0.0
      %170 = vmatpush1.msra.mxu0 0.0
      %171 = vmatprep.subr.mxu0 0.0
      %172 = vmatpush1.msra.mxu0 0.0
      %173 = vmatprep.subr.mxu0 0.0
      %174 = vmatpush1.msra.mxu0 0.0
      %175 = vmatprep.subr.mxu0 0.0
      %176 = vmatpush1.msra.mxu0 0.0
      %177 = vmatprep.subr.mxu0 0.0
      %178 = vmatpush1.msra.mxu0 0.0
      %179 = vmatprep.subr.mxu0 0.0
      %180 = vmatpush1.msra.mxu0 0.0
      %181 = vmatprep.subr.mxu0 0.0
      %182 = vmatpush1.msra.mxu0 0.0
      %183 = vmatprep.subr.mxu0 0.0
      %184 = vmatpush1.msra.mxu0 0.0
      %185 = vmatprep.mubr.f32.mxu0 0.0
      %186 = vmatmul.mubr.f32.gmra.mrb[0].mxu0 %v66
      %v187 = vpop.f32.mrb[0].mxu0
      %v188 = vadd.f32 %v119, %v187
      %v189 = vpop.f32.mrb[0].mxu0
      %190 = vmatprep.mubr.f32.mxu0 0.0
      %191 = vmatmul.mubr.f32.gmra.mrb[0].mxu0 %v67
      %v192 = vpop.f32.mrb[0].mxu0
      %v193 = vadd.f32 %v119, %v192
      %v194 = vpop.f32.mrb[0].mxu0
      %195 = vmatprep.mubr.f32.mxu0 0.0
      %196 = vmatmul.mubr.f32.gmra.mrb[0].mxu0 %v68
      %v197 = vpop.f32.mrb[0].mxu0
      %v198 = vadd.f32 %v119, %v197
      %v199 = vpop.f32.mrb[0].mxu0
      %200 = vmatprep.mubr.f32.mxu0 0.0
      %201 = vmatmul.mubr.f32.gmra.mrb[0].mxu0 %v69
      %v202 = vpop.f32.mrb[0].mxu0
      %v203 = vadd.f32 %v119, %v202
      %v204 = vpop.f32.mrb[0].mxu0
      %205 = vmatprep.mubr.f32.mxu0 0.0
      %206 = vmatmul.mubr.f32.gmra.mrb[0].mxu0 %v70
      %v207 = vpop.f32.mrb[0].mxu0
      %v208 = vadd.f32 %v119, %v207
      %v209 = vpop.f32.mrb[0].mxu0
      %210 = vmatprep.mubr.f32.mxu0 0.0
      %211 = vmatmul.mubr.f32.gmra.mrb[0].mxu0 %v71
      %v212 = vpop.f32.mrb[0].mxu0
      %v213 = vadd.f32 %v119, %v212
      %v214 = vpop.f32.mrb[0].mxu0
      %215 = vmatprep.mubr.f32.mxu0 0.0
      %216 = vmatmul.mubr.f32.gmra.mrb[0].mxu0 %v72
      %v217 = vpop.f32.mrb[0].mxu0
      %v218 = vadd.f32 %v119, %v217
      %v219 = vpop.f32.mrb[0].mxu0
      %220 = vmatprep.mubr.f32.mxu0 0.0
      %221 = vmatmul.mubr.f32.gmra.mrb[0].mxu0 %v73
      %v222 = vpop.f32.mrb[0].mxu0
      %v223 = vadd.f32 %v119, %v222
      %v224 = vpop.f32.mrb[0].mxu0
      %225 = vmatprep.mubr.f32.mxu0 0.0
      %226 = vmatmul.mubr.f32.gmra.mrb[0].mxu0 %v74
      %v227 = vpop.f32.mrb[0].mxu0
      %v228 = vadd.f32 %v119, %v227
      %v229 = vpop.f32.mrb[0].mxu0
      %230 = vmatprep.mubr.f32.mxu0 0.0
      %231 = vmatmul.mubr.f32.gmra.mrb[0].mxu0 %v75
      %v232 = vpop.f32.mrb[0].mxu0
      %v233 = vadd.f32 %v119, %v232
      %v234 = vpop.f32.mrb[0].mxu0
      %235 = vmatprep.mubr.f32.mxu0 0.0
      %236 = vmatmul.mubr.f32.gmra.mrb[0].mxu0 %v76
      %v237 = vpop.f32.mrb[0].mxu0
      %v238 = vadd.f32 %v119, %v237
      %v239 = vpop.f32.mrb[0].mxu0
      %240 = vmatprep.mubr.f32.mxu0 0.0
      %241 = vmatmul.mubr.f32.gmra.mrb[0].mxu0 %v77
      %v242 = vpop.f32.mrb[0].mxu0
      %v243 = vadd.f32 %v119, %v242
      %v244 = vpop.f32.mrb[0].mxu0
      %245 = vmatprep.mubr.f32.mxu0 0.0
      %246 = vmatmul.mubr.f32.gmra.mrb[0].mxu0 %v78
      %v247 = vpop.f32.mrb[0].mxu0
      %v248 = vadd.f32 %v119, %v247
      %v249 = vpop.f32.mrb[0].mxu0
      %250 = vmatprep.mubr.f32.mxu0 0.0
      %251 = vmatmul.mubr.f32.gmra.mrb[0].mxu0 %v79
      %v252 = vpop.f32.mrb[0].mxu0
      %v253 = vadd.f32 %v119, %v252
      %v254 = vpop.f32.mrb[0].mxu0
      %255 = vmatprep.mubr.f32.mxu0 0.0
      %256 = vmatmul.mubr.f32.gmra.mrb[0].mxu0 %v80
      %v257 = vpop.f32.mrb[0].mxu0
      %v258 = vadd.f32 %v119, %v257
      %v259 = vpop.f32.mrb[0].mxu0
      %260 = vmatprep.mubr.f32.mxu0 0.0
      %261 = vmatmul.mubr.f32.gmra.mrb[0].mxu0 %v81
      %v262 = vpop.f32.mrb[0].mxu0
      %v263 = vadd.f32 %v119, %v262
      %v264 = vpop.f32.mrb[0].mxu0
      %265 = vmatprep.mubr.f32.mxu0 0.0
      %266 = vmatmul.mubr.f32.gmra.mrb[0].mxu0 %v82
      %v267 = vpop.f32.mrb[0].mxu0
      %v268 = vadd.f32 %v119, %v267
      %v269 = vpop.f32.mrb[0].mxu0
      %270 = vmatprep.mubr.f32.mxu0 0.0
      %271 = vmatmul.mubr.f32.gmra.mrb[0].mxu0 %v83
      %v272 = vpop.f32.mrb[0].mxu0
      %v273 = vadd.f32 %v119, %v272
      %v274 = vpop.f32.mrb[0].mxu0
      %275 = vmatprep.mubr.f32.mxu0 0.0
      %276 = vmatmul.mubr.f32.gmra.mrb[0].mxu0 %v84
      %v277 = vpop.f32.mrb[0].mxu0
      %v278 = vadd.f32 %v119, %v277
      %v279 = vpop.f32.mrb[0].mxu0
      %280 = vmatprep.mubr.f32.mxu0 0.0
      %281 = vmatmul.mubr.f32.gmra.mrb[0].mxu0 %v85
      %v282 = vpop.f32.mrb[0].mxu0
      %v283 = vadd.f32 %v119, %v282
      %v284 = vpop.f32.mrb[0].mxu0
      %285 = vmatprep.mubr.f32.mxu0 0.0
      %286 = vmatmul.mubr.f32.gmra.mrb[0].mxu0 %v86
      %v287 = vpop.f32.mrb[0].mxu0
      %v288 = vadd.f32 %v119, %v287
      %v289 = vpop.f32.mrb[0].mxu0
      %290 = vmatprep.mubr.f32.mxu0 0.0
      %291 = vmatmul.mubr.f32.gmra.mrb[0].mxu0 %v87
      %v292 = vpop.f32.mrb[0].mxu0
      %v293 = vadd.f32 %v119, %v292
      %v294 = vpop.f32.mrb[0].mxu0
      %295 = vmatprep.mubr.f32.mxu0 0.0
      %296 = vmatmul.mubr.f32.gmra.mrb[0].mxu0 %v88
      %v297 = vpop.f32.mrb[0].mxu0
      %v298 = vadd.f32 %v119, %v297
      %v299 = vpop.f32.mrb[0].mxu0
      %300 = vmatprep.mubr.f32.mxu0 0.0
      %301 = vmatmul.mubr.f32.gmra.mrb[0].mxu0 %v89
      %v302 = vpop.f32.mrb[0].mxu0
      %v303 = vadd.f32 %v119, %v302
      %v304 = vpop.f32.mrb[0].mxu0
      %305 = vmatprep.mubr.f32.mxu0 0.0
      %306 = vmatmul.mubr.f32.gmra.mrb[0].mxu0 %v90
      %v307 = vpop.f32.mrb[0].mxu0
      %v308 = vadd.f32 %v119, %v307
      %v309 = vpop.f32.mrb[0].mxu0
      %310 = vmatprep.mubr.f32.mxu0 0.0
      %311 = vmatmul.mubr.f32.gmra.mrb[0].mxu0 %v91
      %v312 = vpop.f32.mrb[0].mxu0
      %v313 = vadd.f32 %v119, %v312
      %v314 = vpop.f32.mrb[0].mxu0
      %315 = vmatprep.mubr.f32.mxu0 0.0
      %316 = vmatmul.mubr.f32.gmra.mrb[0].mxu0 %v92
      %v317 = vpop.f32.mrb[0].mxu0
      %v318 = vadd.f32 %v119, %v317
      %v319 = vpop.f32.mrb[0].mxu0
      %320 = vmatprep.mubr.f32.mxu0 0.0
      %321 = vmatmul.mubr.f32.gmra.mrb[0].mxu0 %v93
      %v322 = vpop.f32.mrb[0].mxu0
      %v323 = vadd.f32 %v119, %v322
      %v324 = vpop.f32.mrb[0].mxu0
      %325 = vmatprep.mubr.f32.mxu0 0.0
      %326 = vmatmul.mubr.f32.gmra.mrb[0].mxu0 %v94
      %v327 = vpop.f32.mrb[0].mxu0
      %v328 = vadd.f32 %v119, %v327
      %v329 = vpop.f32.mrb[0].mxu0
      %330 = vmatprep.mubr.f32.mxu0 0.0
      %331 = vmatmul.mubr.f32.gmra.mrb[0].mxu0 %v95
      %v332 = vpop.f32.mrb[0].mxu0
      %v333 = vadd.f32 %v119, %v332
      %v334 = vpop.f32.mrb[0].mxu0
      %335 = vmatprep.mubr.f32.mxu0 0.0
      %336 = vmatmul.mubr.f32.gmra.mrb[0].mxu0 %v96
      %v337 = vpop.f32.mrb[0].mxu0
      %v338 = vadd.f32 %v119, %v337
      %v339 = vpop.f32.mrb[0].mxu0
      %340 = vmatprep.mubr.f32.mxu0 0.0
      %341 = vmatmul.mubr.f32.gmra.mrb[0].mxu0 %v97
      %v342 = vpop.f32.mrb[0].mxu0
      %v343 = vadd.f32 %v119, %v342
      %v344 = vpop.f32.mrb[0].mxu0
      %345 = vdwg.mxu0
      %346 = vst [vmem:[#allocation2] sm:$0xff] %v188
      %347 = vst [vmem:[#allocation2 + $0x8] sm:$0xff] %v193
      %348 = vst [vmem:[#allocation2 + $0x10] sm:$0xff] %v198
      %349 = vst [vmem:[#allocation2 + $0x18] sm:$0xff] %v203
      %350 = vst [vmem:[#allocation2 + $0x20] sm:$0xff] %v208
      %351 = vst [vmem:[#allocation2 + $0x28] sm:$0xff] %v213
      %352 = vst [vmem:[#allocation2 + $0x30] sm:$0xff] %v218
      %353 = vst [vmem:[#allocation2 + $0x38] sm:$0xff] %v223
      %354 = vst [vmem:[#allocation2 + $0x40] sm:$0xff] %v228
      %355 = vst [vmem:[#allocation2 + $0x48] sm:$0xff] %v233
      %356 = vst [vmem:[#allocation2 + $0x50] sm:$0xff] %v238
      %357 = vst [vmem:[#allocation2 + $0x58] sm:$0xff] %v243
      %358 = vst [vmem:[#allocation2 + $0x60] sm:$0xff] %v248
      %359 = vst [vmem:[#allocation2 + $0x68] sm:$0xff] %v253
      %360 = vst [vmem:[#allocation2 + $0x70] sm:$0xff] %v258
      %361 = vst [vmem:[#allocation2 + $0x78] sm:$0xff] %v263
      %362 = vst [vmem:[#allocation2 + $0x80] sm:$0xff] %v268
      %363 = vst [vmem:[#allocation2 + $0x88] sm:$0xff] %v273
      %364 = vst [vmem:[#allocation2 + $0x90] sm:$0xff] %v278
      %365 = vst [vmem:[#allocation2 + $0x98] sm:$0xff] %v283
      %366 = vst [vmem:[#allocation2 + $0xa0] sm:$0xff] %v288
      %367 = vst [vmem:[#allocation2 + $0xa8] sm:$0xff] %v293
      %368 = vst [vmem:[#allocation2 + $0xb0] sm:$0xff] %v298
      %369 = vst [vmem:[#allocation2 + $0xb8] sm:$0xff] %v303
      %370 = vst [vmem:[#allocation2 + $0xc0] sm:$0xff] %v308
      %371 = vst [vmem:[#allocation2 + $0xc8] sm:$0xff] %v313
      %372 = vst [vmem:[#allocation2 + $0xd0] sm:$0xff] %v318
      %373 = vst [vmem:[#allocation2 + $0xd8] sm:$0xff] %v323
      %374 = vst [vmem:[#allocation2 + $0xe0] sm:$0xff] %v328
      %375 = vst [vmem:[#allocation2 + $0xe8] sm:$0xff] %v333
      %376 = vst [vmem:[#allocation2 + $0xf0] sm:$0xff] %v338
      %377 = vst [vmem:[#allocation2 + $0xf8] sm:$0xff] %v343
    $region37: #{tpu_custom_call.1} parent=1 // pred_fallthru
      _
    %s378 = smul.u32 0, 256
    %s379 = scalar_lea.vmem [#allocation3], %s378
    %v380 = vld [vmem:[%s379] sm:$0xff]
    %v381 = vld [vmem:[%s379 + $0x8] sm:$0xff]
    %v382 = vld [vmem:[%s379 + $0x10] sm:$0xff]
    %v383 = vld [vmem:[%s379 + $0x18] sm:$0xff]
    %v384 = vld [vmem:[%s379 + $0x20] sm:$0xff]
    %v385 = vld [vmem:[%s379 + $0x28] sm:$0xff]
    %v386 = vld [vmem:[%s379 + $0x30] sm:$0xff]
    %v387 = vld [vmem:[%s379 + $0x38] sm:$0xff]
    %v388 = vld [vmem:[%s379 + $0x40] sm:$0xff]
    %v389 = vld [vmem:[%s379 + $0x48] sm:$0xff]
    %v390 = vld [vmem:[%s379 + $0x50] sm:$0xff]
    %v391 = vld [vmem:[%s379 + $0x58] sm:$0xff]
    %v392 = vld [vmem:[%s379 + $0x60] sm:$0xff]
    %v393 = vld [vmem:[%s379 + $0x68] sm:$0xff]
    %v394 = vld [vmem:[%s379 + $0x70] sm:$0xff]
    %v395 = vld [vmem:[%s379 + $0x78] sm:$0xff]
    %v396 = vld [vmem:[%s379 + $0x80] sm:$0xff]
    %v397 = vld [vmem:[%s379 + $0x88] sm:$0xff]
    %v398 = vld [vmem:[%s379 + $0x90] sm:$0xff]
    %v399 = vld [vmem:[%s379 + $0x98] sm:$0xff]
    %v400 = vld [vmem:[%s379 + $0xa0] sm:$0xff]
    %v401 = vld [vmem:[%s379 + $0xa8] sm:$0xff]
    %v402 = vld [vmem:[%s379 + $0xb0] sm:$0xff]
    %v403 = vld [vmem:[%s379 + $0xb8] sm:$0xff]
    %v404 = vld [vmem:[%s379 + $0xc0] sm:$0xff]
    %v405 = vld [vmem:[%s379 + $0xc8] sm:$0xff]
    %v406 = vld [vmem:[%s379 + $0xd0] sm:$0xff]
    %v407 = vld [vmem:[%s379 + $0xd8] sm:$0xff]
    %v408 = vld [vmem:[%s379 + $0xe0] sm:$0xff]
    %v409 = vld [vmem:[%s379 + $0xe8] sm:$0xff]
    %v410 = vld [vmem:[%s379 + $0xf0] sm:$0xff]
    %v411 = vld [vmem:[%s379 + $0xf8] sm:$0xff]
    %v412 = vld [vmem:[#allocation6] sm:$0xff]
    %v413 = vld [vmem:[#allocation6 + $0x8] sm:$0xff]
    %v414 = vld [vmem:[#allocation6 + $0x10] sm:$0xff]
    %v415 = vld [vmem:[#allocation6 + $0x18] sm:$0xff]
    %v416 = vld [vmem:[#allocation6 + $0x20] sm:$0xff]
    %v417 = vld [vmem:[#allocation6 + $0x28] sm:$0xff]
    %v418 = vld [vmem:[#allocation6 + $0x30] sm:$0xff]
    %v419 = vld [vmem:[#allocation6 + $0x38] sm:$0xff]
    %v420 = vld [vmem:[#allocation6 + $0x40] sm:$0xff]
    %v421 = vld [vmem:[#allocation6 + $0x48] sm:$0xff]
    %v422 = vld [vmem:[#allocation6 + $0x50] sm:$0xff]
    %v423 = vld [vmem:[#allocation6 + $0x58] sm:$0xff]
    %v424 = vld [vmem:[#allocation6 + $0x60] sm:$0xff]
    %v425 = vld [vmem:[#allocation6 + $0x68] sm:$0xff]
    %v426 = vld [vmem:[#allocation6 + $0x70] sm:$0xff]
    %v427 = vld [vmem:[#allocation6 + $0x78] sm:$0xff]
    %v428 = vld [vmem:[%s2] sm:$0x1]
    %v430 = vlaneseq
    %v431 = vshrl.u32 %v430, 7
    %v432 = vsub.s32 0, %v431
    %v433 = vrot.slane %v428, %v432
    %435 = vmatprep.subr.mxu0 0.0
    %436 = vmatpush1.msra.mxu0 %v412
    %437 = vmatprep.subr.mxu0 0.0
    %438 = vmatpush1.msra.mxu0 %v413
    %439 = vmatprep.subr.mxu0 0.0
    %440 = vmatpush1.msra.mxu0 %v414
    %441 = vmatprep.subr.mxu0 0.0
    %442 = vmatpush1.msra.mxu0 %v415
    %443 = vmatprep.subr.mxu0 0.0
    %444 = vmatpush1.msra.mxu0 %v416
    %445 = vmatprep.subr.mxu0 0.0
    %446 = vmatpush1.msra.mxu0 %v417
    %447 = vmatprep.subr.mxu0 0.0
    %448 = vmatpush1.msra.mxu0 %v418
    %449 = vmatprep.subr.mxu0 0.0
    %450 = vmatpush1.msra.mxu0 %v419
    %451 = vmatprep.subr.mxu0 0.0
    %452 = vmatpush1.msra.mxu0 %v420
    %453 = vmatprep.subr.mxu0 0.0
    %454 = vmatpush1.msra.mxu0 %v421
    %455 = vmatprep.subr.mxu0 0.0
    %456 = vmatpush1.msra.mxu0 %v422
    %457 = vmatprep.subr.mxu0 0.0
    %458 = vmatpush1.msra.mxu0 %v423
    %459 = vmatprep.subr.mxu0 0.0
    %460 = vmatpush1.msra.mxu0 %v424
    %461 = vmatprep.subr.mxu0 0.0
    %462 = vmatpush1.msra.mxu0 %v425
    %463 = vmatprep.subr.mxu0 0.0
    %464 = vmatpush1.msra.mxu0 %v426
    %465 = vmatprep.subr.mxu0 0.0
    %466 = vmatpush1.msra.mxu0 %v427
    %467 = vmatprep.subr.mxu0 0.0
    %468 = vmatpush1.msra.mxu0 0.0
    %469 = vmatprep.subr.mxu0 0.0
    %470 = vmatpush1.msra.mxu0 0.0
    %471 = vmatprep.subr.mxu0 0.0
    %472 = vmatpush1.msra.mxu0 0.0
    %473 = vmatprep.subr.mxu0 0.0
    %474 = vmatpush1.msra.mxu0 0.0
    %475 = vmatprep.subr.mxu0 0.0
    %476 = vmatpush1.msra.mxu0 0.0
    %477 = vmatprep.subr.mxu0 0.0
    %478 = vmatpush1.msra.mxu0 0.0
    %479 = vmatprep.subr.mxu0 0.0
    %480 = vmatpush1.msra.mxu0 0.0
    %481 = vmatprep.subr.mxu0 0.0
    %482 = vmatpush1.msra.mxu0 0.0
    %483 = vmatprep.subr.mxu0 0.0
    %484 = vmatpush1.msra.mxu0 0.0
    %485 = vmatprep.subr.mxu0 0.0
    %486 = vmatpush1.msra.mxu0 0.0
    %487 = vmatprep.subr.mxu0 0.0
    %488 = vmatpush1.msra.mxu0 0.0
    %489 = vmatprep.subr.mxu0 0.0
    %490 = vmatpush1.msra.mxu0 0.0
    %491 = vmatprep.subr.mxu0 0.0
    %492 = vmatpush1.msra.mxu0 0.0
    %493 = vmatprep.subr.mxu0 0.0
    %494 = vmatpush1.msra.mxu0 0.0
    %495 = vmatprep.subr.mxu0 0.0
    %496 = vmatpush1.msra.mxu0 0.0
    %497 = vmatprep.subr.mxu0 0.0
    %498 = vmatpush1.msra.mxu0 0.0
    %499 = vmatprep.mubr.f32.mxu0 0.0
    %500 = vmatmul.mubr.f32.gmra.mrb[0].mxu0 %v380
    %v501 = vpop.f32.mrb[0].mxu0
    %v502 = vadd.f32 %v433, %v501
    %v503 = vpop.f32.mrb[0].mxu0
    %504 = vmatprep.mubr.f32.mxu0 0.0
    %505 = vmatmul.mubr.f32.gmra.mrb[0].mxu0 %v381
    %v506 = vpop.f32.mrb[0].mxu0
    %v507 = vadd.f32 %v433, %v506
    %v508 = vpop.f32.mrb[0].mxu0
    %509 = vmatprep.mubr.f32.mxu0 0.0
    %510 = vmatmul.mubr.f32.gmra.mrb[0].mxu0 %v382
    %v511 = vpop.f32.mrb[0].mxu0
    %v512 = vadd.f32 %v433, %v511
    %v513 = vpop.f32.mrb[0].mxu0
    %514 = vmatprep.mubr.f32.mxu0 0.0
    %515 = vmatmul.mubr.f32.gmra.mrb[0].mxu0 %v383
    %v516 = vpop.f32.mrb[0].mxu0
    %v517 = vadd.f32 %v433, %v516
    %v518 = vpop.f32.mrb[0].mxu0
    %519 = vmatprep.mubr.f32.mxu0 0.0
    %520 = vmatmul.mubr.f32.gmra.mrb[0].mxu0 %v384
    %v521 = vpop.f32.mrb[0].mxu0
    %v522 = vadd.f32 %v433, %v521
    %v523 = vpop.f32.mrb[0].mxu0
    %524 = vmatprep.mubr.f32.mxu0 0.0
    %525 = vmatmul.mubr.f32.gmra.mrb[0].mxu0 %v385
    %v526 = vpop.f32.mrb[0].mxu0
    %v527 = vadd.f32 %v433, %v526
    %v528 = vpop.f32.mrb[0].mxu0
    %529 = vmatprep.mubr.f32.mxu0 0.0
    %530 = vmatmul.mubr.f32.gmra.mrb[0].mxu0 %v386
    %v531 = vpop.f32.mrb[0].mxu0
    %v532 = vadd.f32 %v433, %v531
    %v533 = vpop.f32.mrb[0].mxu0
    %534 = vmatprep.mubr.f32.mxu0 0.0
    %535 = vmatmul.mubr.f32.gmra.mrb[0].mxu0 %v387
    %v536 = vpop.f32.mrb[0].mxu0
    %v537 = vadd.f32 %v433, %v536
    %v538 = vpop.f32.mrb[0].mxu0
    %539 = vmatprep.mubr.f32.mxu0 0.0
    %540 = vmatmul.mubr.f32.gmra.mrb[0].mxu0 %v388
    %v541 = vpop.f32.mrb[0].mxu0
    %v542 = vadd.f32 %v433, %v541
    %v543 = vpop.f32.mrb[0].mxu0
    %544 = vmatprep.mubr.f32.mxu0 0.0
    %545 = vmatmul.mubr.f32.gmra.mrb[0].mxu0 %v389
    %v546 = vpop.f32.mrb[0].mxu0
    %v547 = vadd.f32 %v433, %v546
    %v548 = vpop.f32.mrb[0].mxu0
    %549 = vmatprep.mubr.f32.mxu0 0.0
    %550 = vmatmul.mubr.f32.gmra.mrb[0].mxu0 %v390
    %v551 = vpop.f32.mrb[0].mxu0
    %v552 = vadd.f32 %v433, %v551
    %v553 = vpop.f32.mrb[0].mxu0
    %554 = vmatprep.mubr.f32.mxu0 0.0
    %555 = vmatmul.mubr.f32.gmra.mrb[0].mxu0 %v391
    %v556 = vpop.f32.mrb[0].mxu0
    %v557 = vadd.f32 %v433, %v556
    %v558 = vpop.f32.mrb[0].mxu0
    %559 = vmatprep.mubr.f32.mxu0 0.0
    %560 = vmatmul.mubr.f32.gmra.mrb[0].mxu0 %v392
    %v561 = vpop.f32.mrb[0].mxu0
    %v562 = vadd.f32 %v433, %v561
    %v563 = vpop.f32.mrb[0].mxu0
    %564 = vmatprep.mubr.f32.mxu0 0.0
    %565 = vmatmul.mubr.f32.gmra.mrb[0].mxu0 %v393
    %v566 = vpop.f32.mrb[0].mxu0
    %v567 = vadd.f32 %v433, %v566
    %v568 = vpop.f32.mrb[0].mxu0
    %569 = vmatprep.mubr.f32.mxu0 0.0
    %570 = vmatmul.mubr.f32.gmra.mrb[0].mxu0 %v394
    %v571 = vpop.f32.mrb[0].mxu0
    %v572 = vadd.f32 %v433, %v571
    %v573 = vpop.f32.mrb[0].mxu0
    %574 = vmatprep.mubr.f32.mxu0 0.0
    %575 = vmatmul.mubr.f32.gmra.mrb[0].mxu0 %v395
    %v576 = vpop.f32.mrb[0].mxu0
    %v577 = vadd.f32 %v433, %v576
    %v578 = vpop.f32.mrb[0].mxu0
    %579 = vmatprep.mubr.f32.mxu0 0.0
    %580 = vmatmul.mubr.f32.gmra.mrb[0].mxu0 %v396
    %v581 = vpop.f32.mrb[0].mxu0
    %v582 = vadd.f32 %v433, %v581
    %v583 = vpop.f32.mrb[0].mxu0
    %584 = vmatprep.mubr.f32.mxu0 0.0
    %585 = vmatmul.mubr.f32.gmra.mrb[0].mxu0 %v397
    %v586 = vpop.f32.mrb[0].mxu0
    %v587 = vadd.f32 %v433, %v586
    %v588 = vpop.f32.mrb[0].mxu0
    %589 = vmatprep.mubr.f32.mxu0 0.0
    %590 = vmatmul.mubr.f32.gmra.mrb[0].mxu0 %v398
    %v591 = vpop.f32.mrb[0].mxu0
    %v592 = vadd.f32 %v433, %v591
    %v593 = vpop.f32.mrb[0].mxu0
    %594 = vmatprep.mubr.f32.mxu0 0.0
    %595 = vmatmul.mubr.f32.gmra.mrb[0].mxu0 %v399
    %v596 = vpop.f32.mrb[0].mxu0
    %v597 = vadd.f32 %v433, %v596
    %v598 = vpop.f32.mrb[0].mxu0
    %599 = vmatprep.mubr.f32.mxu0 0.0
    %600 = vmatmul.mubr.f32.gmra.mrb[0].mxu0 %v400
    %v601 = vpop.f32.mrb[0].mxu0
    %v602 = vadd.f32 %v433, %v601
    %v603 = vpop.f32.mrb[0].mxu0
    %604 = vmatprep.mubr.f32.mxu0 0.0
    %605 = vmatmul.mubr.f32.gmra.mrb[0].mxu0 %v401
    %v606 = vpop.f32.mrb[0].mxu0
    %v607 = vadd.f32 %v433, %v606
    %v608 = vpop.f32.mrb[0].mxu0
    %609 = vmatprep.mubr.f32.mxu0 0.0
    %610 = vmatmul.mubr.f32.gmra.mrb[0].mxu0 %v402
    %v611 = vpop.f32.mrb[0].mxu0
    %v612 = vadd.f32 %v433, %v611
    %v613 = vpop.f32.mrb[0].mxu0
    %614 = vmatprep.mubr.f32.mxu0 0.0
    %615 = vmatmul.mubr.f32.gmra.mrb[0].mxu0 %v403
    %v616 = vpop.f32.mrb[0].mxu0
    %v617 = vadd.f32 %v433, %v616
    %v618 = vpop.f32.mrb[0].mxu0
    %619 = vmatprep.mubr.f32.mxu0 0.0
    %620 = vmatmul.mubr.f32.gmra.mrb[0].mxu0 %v404
    %v621 = vpop.f32.mrb[0].mxu0
    %v622 = vadd.f32 %v433, %v621
    %v623 = vpop.f32.mrb[0].mxu0
    %624 = vmatprep.mubr.f32.mxu0 0.0
    %625 = vmatmul.mubr.f32.gmra.mrb[0].mxu0 %v405
    %v626 = vpop.f32.mrb[0].mxu0
    %v627 = vadd.f32 %v433, %v626
    %v628 = vpop.f32.mrb[0].mxu0
    %629 = vmatprep.mubr.f32.mxu0 0.0
    %630 = vmatmul.mubr.f32.gmra.mrb[0].mxu0 %v406
    %v631 = vpop.f32.mrb[0].mxu0
    %v632 = vadd.f32 %v433, %v631
    %v633 = vpop.f32.mrb[0].mxu0
    %634 = vmatprep.mubr.f32.mxu0 0.0
    %635 = vmatmul.mubr.f32.gmra.mrb[0].mxu0 %v407
    %v636 = vpop.f32.mrb[0].mxu0
    %v637 = vadd.f32 %v433, %v636
    %v638 = vpop.f32.mrb[0].mxu0
    %639 = vmatprep.mubr.f32.mxu0 0.0
    %640 = vmatmul.mubr.f32.gmra.mrb[0].mxu0 %v408
    %v641 = vpop.f32.mrb[0].mxu0
    %v642 = vadd.f32 %v433, %v641
    %v643 = vpop.f32.mrb[0].mxu0
    %644 = vmatprep.mubr.f32.mxu0 0.0
    %645 = vmatmul.mubr.f32.gmra.mrb[0].mxu0 %v409
    %v646 = vpop.f32.mrb[0].mxu0
    %v647 = vadd.f32 %v433, %v646
    %v648 = vpop.f32.mrb[0].mxu0
    %649 = vmatprep.mubr.f32.mxu0 0.0
    %650 = vmatmul.mubr.f32.gmra.mrb[0].mxu0 %v410
    %v651 = vpop.f32.mrb[0].mxu0
    %v652 = vadd.f32 %v433, %v651
    %v653 = vpop.f32.mrb[0].mxu0
    %654 = vmatprep.mubr.f32.mxu0 0.0
    %655 = vmatmul.mubr.f32.gmra.mrb[0].mxu0 %v411
    %v656 = vpop.f32.mrb[0].mxu0
    %v657 = vadd.f32 %v433, %v656
    %v658 = vpop.f32.mrb[0].mxu0
    %659 = vdwg.mxu0
    %v660 = vld [vmem:[#allocation2] sm:$0xff]
    %v661 = vld [vmem:[#allocation2 + $0x8] sm:$0xff]
    %v662 = vld [vmem:[#allocation2 + $0x10] sm:$0xff]
    %v663 = vld [vmem:[#allocation2 + $0x18] sm:$0xff]
    %v664 = vld [vmem:[#allocation2 + $0x20] sm:$0xff]
    %v665 = vld [vmem:[#allocation2 + $0x28] sm:$0xff]
    %v666 = vld [vmem:[#allocation2 + $0x30] sm:$0xff]
    %v667 = vld [vmem:[#allocation2 + $0x38] sm:$0xff]
    %v668 = vld [vmem:[#allocation2 + $0x40] sm:$0xff]
    %v669 = vld [vmem:[#allocation2 + $0x48] sm:$0xff]
    %v670 = vld [vmem:[#allocation2 + $0x50] sm:$0xff]
    %v671 = vld [vmem:[#allocation2 + $0x58] sm:$0xff]
    %v672 = vld [vmem:[#allocation2 + $0x60] sm:$0xff]
    %v673 = vld [vmem:[#allocation2 + $0x68] sm:$0xff]
    %v674 = vld [vmem:[#allocation2 + $0x70] sm:$0xff]
    %v675 = vld [vmem:[#allocation2 + $0x78] sm:$0xff]
    %v676 = vld [vmem:[#allocation2 + $0x80] sm:$0xff]
    %v677 = vld [vmem:[#allocation2 + $0x88] sm:$0xff]
    %v678 = vld [vmem:[#allocation2 + $0x90] sm:$0xff]
    %v679 = vld [vmem:[#allocation2 + $0x98] sm:$0xff]
    %v680 = vld [vmem:[#allocation2 + $0xa0] sm:$0xff]
    %v681 = vld [vmem:[#allocation2 + $0xa8] sm:$0xff]
    %v682 = vld [vmem:[#allocation2 + $0xb0] sm:$0xff]
    %v683 = vld [vmem:[#allocation2 + $0xb8] sm:$0xff]
    %v684 = vld [vmem:[#allocation2 + $0xc0] sm:$0xff]
    %v685 = vld [vmem:[#allocation2 + $0xc8] sm:$0xff]
    %v686 = vld [vmem:[#allocation2 + $0xd0] sm:$0xff]
    %v687 = vld [vmem:[#allocation2 + $0xd8] sm:$0xff]
    %v688 = vld [vmem:[#allocation2 + $0xe0] sm:$0xff]
    %v689 = vld [vmem:[#allocation2 + $0xe8] sm:$0xff]
    %v690 = vld [vmem:[#allocation2 + $0xf0] sm:$0xff]
    %v691 = vld [vmem:[#allocation2 + $0xf8] sm:$0xff]
    %692 = vmatprep.subr.mxu0 0.0
    %693 = vmatpush1.xpose.msra.mxu0 %v660
    %694 = vmatprep.subr.mxu0 0.0
    %695 = vmatpush1.xpose.msra.mxu0 %v661
    %696 = vmatprep.subr.mxu0 0.0
    %697 = vmatpush1.xpose.msra.mxu0 %v662
    %698 = vmatprep.subr.mxu0 0.0
    %699 = vmatpush1.xpose.msra.mxu0 %v663
    %700 = vmatprep.subr.mxu0 0.0
    %701 = vmatpush1.xpose.msra.mxu0 %v664
    %702 = vmatprep.subr.mxu0 0.0
    %703 = vmatpush1.xpose.msra.mxu0 %v665
    %704 = vmatprep.subr.mxu0 0.0
    %705 = vmatpush1.xpose.msra.mxu0 %v666
    %706 = vmatprep.subr.mxu0 0.0
    %707 = vmatpush1.xpose.msra.mxu0 %v667
    %708 = vmatprep.subr.mxu0 0.0
    %709 = vmatpush1.xpose.msra.mxu0 %v668
    %710 = vmatprep.subr.mxu0 0.0
    %711 = vmatpush1.xpose.msra.mxu0 %v669
    %712 = vmatprep.subr.mxu0 0.0
    %713 = vmatpush1.xpose.msra.mxu0 %v670
    %714 = vmatprep.subr.mxu0 0.0
    %715 = vmatpush1.xpose.msra.mxu0 %v671
    %716 = vmatprep.subr.mxu0 0.0
    %717 = vmatpush1.xpose.msra.mxu0 %v672
    %718 = vmatprep.subr.mxu0 0.0
    %719 = vmatpush1.xpose.msra.mxu0 %v673
    %720 = vmatprep.subr.mxu0 0.0
    %721 = vmatpush1.xpose.msra.mxu0 %v674
    %722 = vmatprep.subr.mxu0 0.0
    %723 = vmatpush1.xpose.msra.mxu0 %v675
    %724 = vmatprep.subr.mxu0 0.0
    %725 = vmatpush1.xpose.msra.mxu0 %v676
    %726 = vmatprep.subr.mxu0 0.0
    %727 = vmatpush1.xpose.msra.mxu0 %v677
    %728 = vmatprep.subr.mxu0 0.0
    %729 = vmatpush1.xpose.msra.mxu0 %v678
    %730 = vmatprep.subr.mxu0 0.0
    %731 = vmatpush1.xpose.msra.mxu0 %v679
    %732 = vmatprep.subr.mxu0 0.0
    %733 = vmatpush1.xpose.msra.mxu0 %v680
    %734 = vmatprep.subr.mxu0 0.0
    %735 = vmatpush1.xpose.msra.mxu0 %v681
    %736 = vmatprep.subr.mxu0 0.0
    %737 = vmatpush1.xpose.msra.mxu0 %v682
    %738 = vmatprep.subr.mxu0 0.0
    %739 = vmatpush1.xpose.msra.mxu0 %v683
    %740 = vmatprep.subr.mxu0 0.0
    %741 = vmatpush1.xpose.msra.mxu0 %v684
    %742 = vmatprep.subr.mxu0 0.0
    %743 = vmatpush1.xpose.msra.mxu0 %v685
    %744 = vmatprep.subr.mxu0 0.0
    %745 = vmatpush1.xpose.msra.mxu0 %v686
    %746 = vmatprep.subr.mxu0 0.0
    %747 = vmatpush1.xpose.msra.mxu0 %v687
    %748 = vmatprep.subr.mxu0 0.0
    %749 = vmatpush1.xpose.msra.mxu0 %v688
    %750 = vmatprep.subr.mxu0 0.0
    %751 = vmatpush1.xpose.msra.mxu0 %v689
    %752 = vmatprep.subr.mxu0 0.0
    %753 = vmatpush1.xpose.msra.mxu0 %v690
    %754 = vmatprep.subr.mxu0 0.0
    %755 = vmatpush1.xpose.msra.mxu0 %v691
    %756 = vmatprep.mubr.f32.mxu0 0.0
    %757 = vmatmul.mubr.f32.gmra.mrb[0].mxu0 %v502
    %v758 = vpop.f32.mrb[0].mxu0
    %v759 = vadd.f32 0.0, %v758
    %v760 = vpop.f32.mrb[0].mxu0
    %v761 = vadd.f32 0.0, %v760
    %762 = vmatprep.mubr.f32.mxu0 0.0
    %763 = vmatmul.mubr.f32.gmra.mrb[0].mxu0 %v507
    %v764 = vpop.f32.mrb[0].mxu0
    %v765 = vadd.f32 0.0, %v764
    %v766 = vpop.f32.mrb[0].mxu0
    %v767 = vadd.f32 0.0, %v766
    %768 = vmatprep.mubr.f32.mxu0 0.0
    %769 = vmatmul.mubr.f32.gmra.mrb[0].mxu0 %v512
    %v770 = vpop.f32.mrb[0].mxu0
    %v771 = vadd.f32 0.0, %v770
    %v772 = vpop.f32.mrb[0].mxu0
    %v773 = vadd.f32 0.0, %v772
    %774 = vmatprep.mubr.f32.mxu0 0.0
    %775 = vmatmul.mubr.f32.gmra.mrb[0].mxu0 %v517
    %v776 = vpop.f32.mrb[0].mxu0
    %v777 = vadd.f32 0.0, %v776
    %v778 = vpop.f32.mrb[0].mxu0
    %v779 = vadd.f32 0.0, %v778
    %780 = vmatprep.mubr.f32.mxu0 0.0
    %781 = vmatmul.mubr.f32.gmra.mrb[0].mxu0 %v522
    %v782 = vpop.f32.mrb[0].mxu0
    %v783 = vadd.f32 0.0, %v782
    %v784 = vpop.f32.mrb[0].mxu0
    %v785 = vadd.f32 0.0, %v784
    %786 = vmatprep.mubr.f32.mxu0 0.0
    %787 = vmatmul.mubr.f32.gmra.mrb[0].mxu0 %v527
    %v788 = vpop.f32.mrb[0].mxu0
    %v789 = vadd.f32 0.0, %v788
    %v790 = vpop.f32.mrb[0].mxu0
    %v791 = vadd.f32 0.0, %v790
    %792 = vmatprep.mubr.f32.mxu0 0.0
    %793 = vmatmul.mubr.f32.gmra.mrb[0].mxu0 %v532
    %v794 = vpop.f32.mrb[0].mxu0
    %v795 = vadd.f32 0.0, %v794
    %v796 = vpop.f32.mrb[0].mxu0
    %v797 = vadd.f32 0.0, %v796
    %798 = vmatprep.mubr.f32.mxu0 0.0
    %799 = vmatmul.mubr.f32.gmra.mrb[0].mxu0 %v537
    %v800 = vpop.f32.mrb[0].mxu0
    %v801 = vadd.f32 0.0, %v800
    %v802 = vpop.f32.mrb[0].mxu0
    %v803 = vadd.f32 0.0, %v802
    %804 = vmatprep.mubr.f32.mxu0 0.0
    %805 = vmatmul.mubr.f32.gmra.mrb[0].mxu0 %v542
    %v806 = vpop.f32.mrb[0].mxu0
    %v807 = vadd.f32 0.0, %v806
    %v808 = vpop.f32.mrb[0].mxu0
    %v809 = vadd.f32 0.0, %v808
    %810 = vmatprep.mubr.f32.mxu0 0.0
    %811 = vmatmul.mubr.f32.gmra.mrb[0].mxu0 %v547
    %v812 = vpop.f32.mrb[0].mxu0
    %v813 = vadd.f32 0.0, %v812
    %v814 = vpop.f32.mrb[0].mxu0
    %v815 = vadd.f32 0.0, %v814
    %816 = vmatprep.mubr.f32.mxu0 0.0
    %817 = vmatmul.mubr.f32.gmra.mrb[0].mxu0 %v552
    %v818 = vpop.f32.mrb[0].mxu0
    %v819 = vadd.f32 0.0, %v818
    %v820 = vpop.f32.mrb[0].mxu0
    %v821 = vadd.f32 0.0, %v820
    %822 = vmatprep.mubr.f32.mxu0 0.0
    %823 = vmatmul.mubr.f32.gmra.mrb[0].mxu0 %v557
    %v824 = vpop.f32.mrb[0].mxu0
    %v825 = vadd.f32 0.0, %v824
    %v826 = vpop.f32.mrb[0].mxu0
    %v827 = vadd.f32 0.0, %v826
    %828 = vmatprep.mubr.f32.mxu0 0.0
    %829 = vmatmul.mubr.f32.gmra.mrb[0].mxu0 %v562
    %v830 = vpop.f32.mrb[0].mxu0
    %v831 = vadd.f32 0.0, %v830
    %v832 = vpop.f32.mrb[0].mxu0
    %v833 = vadd.f32 0.0, %v832
    %834 = vmatprep.mubr.f32.mxu0 0.0
    %835 = vmatmul.mubr.f32.gmra.mrb[0].mxu0 %v567
    %v836 = vpop.f32.mrb[0].mxu0
    %v837 = vadd.f32 0.0, %v836
    %v838 = vpop.f32.mrb[0].mxu0
    %v839 = vadd.f32 0.0, %v838
    %840 = vmatprep.mubr.f32.mxu0 0.0
    %841 = vmatmul.mubr.f32.gmra.mrb[0].mxu0 %v572
    %v842 = vpop.f32.mrb[0].mxu0
    %v843 = vadd.f32 0.0, %v842
    %v844 = vpop.f32.mrb[0].mxu0
    %v845 = vadd.f32 0.0, %v844
    %846 = vmatprep.mubr.f32.mxu0 0.0
    %847 = vmatmul.mubr.f32.gmra.mrb[0].mxu0 %v577
    %v848 = vpop.f32.mrb[0].mxu0
    %v849 = vadd.f32 0.0, %v848
    %v850 = vpop.f32.mrb[0].mxu0
    %v851 = vadd.f32 0.0, %v850
    %852 = vmatprep.mubr.f32.mxu0 0.0
    %853 = vmatmul.mubr.f32.gmra.mrb[0].mxu0 %v582
    %v854 = vpop.f32.mrb[0].mxu0
    %v855 = vadd.f32 0.0, %v854
    %v856 = vpop.f32.mrb[0].mxu0
    %v857 = vadd.f32 0.0, %v856
    %858 = vmatprep.mubr.f32.mxu0 0.0
    %859 = vmatmul.mubr.f32.gmra.mrb[0].mxu0 %v587
    %v860 = vpop.f32.mrb[0].mxu0
    %v861 = vadd.f32 0.0, %v860
    %v862 = vpop.f32.mrb[0].mxu0
    %v863 = vadd.f32 0.0, %v862
    %864 = vmatprep.mubr.f32.mxu0 0.0
    %865 = vmatmul.mubr.f32.gmra.mrb[0].mxu0 %v592
    %v866 = vpop.f32.mrb[0].mxu0
    %v867 = vadd.f32 0.0, %v866
    %v868 = vpop.f32.mrb[0].mxu0
    %v869 = vadd.f32 0.0, %v868
    %870 = vmatprep.mubr.f32.mxu0 0.0
    %871 = vmatmul.mubr.f32.gmra.mrb[0].mxu0 %v597
    %v872 = vpop.f32.mrb[0].mxu0
    %v873 = vadd.f32 0.0, %v872
    %v874 = vpop.f32.mrb[0].mxu0
    %v875 = vadd.f32 0.0, %v874
    %876 = vmatprep.mubr.f32.mxu0 0.0
    %877 = vmatmul.mubr.f32.gmra.mrb[0].mxu0 %v602
    %v878 = vpop.f32.mrb[0].mxu0
    %v879 = vadd.f32 0.0, %v878
    %v880 = vpop.f32.mrb[0].mxu0
    %v881 = vadd.f32 0.0, %v880
    %882 = vmatprep.mubr.f32.mxu0 0.0
    %883 = vmatmul.mubr.f32.gmra.mrb[0].mxu0 %v607
    %v884 = vpop.f32.mrb[0].mxu0
    %v885 = vadd.f32 0.0, %v884
    %v886 = vpop.f32.mrb[0].mxu0
    %v887 = vadd.f32 0.0, %v886
    %888 = vmatprep.mubr.f32.mxu0 0.0
    %889 = vmatmul.mubr.f32.gmra.mrb[0].mxu0 %v612
    %v890 = vpop.f32.mrb[0].mxu0
    %v891 = vadd.f32 0.0, %v890
    %v892 = vpop.f32.mrb[0].mxu0
    %v893 = vadd.f32 0.0, %v892
    %894 = vmatprep.mubr.f32.mxu0 0.0
    %895 = vmatmul.mubr.f32.gmra.mrb[0].mxu0 %v617
    %v896 = vpop.f32.mrb[0].mxu0
    %v897 = vadd.f32 0.0, %v896
    %v898 = vpop.f32.mrb[0].mxu0
    %v899 = vadd.f32 0.0, %v898
    %900 = vmatprep.mubr.f32.mxu0 0.0
    %901 = vmatmul.mubr.f32.gmra.mrb[0].mxu0 %v622
    %v902 = vpop.f32.mrb[0].mxu0
    %v903 = vadd.f32 0.0, %v902
    %v904 = vpop.f32.mrb[0].mxu0
    %v905 = vadd.f32 0.0, %v904
    %906 = vmatprep.mubr.f32.mxu0 0.0
    %907 = vmatmul.mubr.f32.gmra.mrb[0].mxu0 %v627
    %v908 = vpop.f32.mrb[0].mxu0
    %v909 = vadd.f32 0.0, %v908
    %v910 = vpop.f32.mrb[0].mxu0
    %v911 = vadd.f32 0.0, %v910
    %912 = vmatprep.mubr.f32.mxu0 0.0
    %913 = vmatmul.mubr.f32.gmra.mrb[0].mxu0 %v632
    %v914 = vpop.f32.mrb[0].mxu0
    %v915 = vadd.f32 0.0, %v914
    %v916 = vpop.f32.mrb[0].mxu0
    %v917 = vadd.f32 0.0, %v916
    %918 = vmatprep.mubr.f32.mxu0 0.0
    %919 = vmatmul.mubr.f32.gmra.mrb[0].mxu0 %v637
    %v920 = vpop.f32.mrb[0].mxu0
    %v921 = vadd.f32 0.0, %v920
    %v922 = vpop.f32.mrb[0].mxu0
    %v923 = vadd.f32 0.0, %v922
    %924 = vmatprep.mubr.f32.mxu0 0.0
    %925 = vmatmul.mubr.f32.gmra.mrb[0].mxu0 %v642
    %v926 = vpop.f32.mrb[0].mxu0
    %v927 = vadd.f32 0.0, %v926
    %v928 = vpop.f32.mrb[0].mxu0
    %v929 = vadd.f32 0.0, %v928
    %930 = vmatprep.mubr.f32.mxu0 0.0
    %931 = vmatmul.mubr.f32.gmra.mrb[0].mxu0 %v647
    %v932 = vpop.f32.mrb[0].mxu0
    %v933 = vadd.f32 0.0, %v932
    %v934 = vpop.f32.mrb[0].mxu0
    %v935 = vadd.f32 0.0, %v934
    %936 = vmatprep.mubr.f32.mxu0 0.0
    %937 = vmatmul.mubr.f32.gmra.mrb[0].mxu0 %v652
    %v938 = vpop.f32.mrb[0].mxu0
    %v939 = vadd.f32 0.0, %v938
    %v940 = vpop.f32.mrb[0].mxu0
    %v941 = vadd.f32 0.0, %v940
    %942 = vmatprep.mubr.f32.mxu0 0.0
    %943 = vmatmul.mubr.f32.gmra.mrb[0].mxu0 %v657
    %v944 = vpop.f32.mrb[0].mxu0
    %v945 = vadd.f32 0.0, %v944
    %v946 = vpop.f32.mrb[0].mxu0
    %v947 = vadd.f32 0.0, %v946
    %948 = vdwg.mxu0
    %v949 = vmul.f32 %v759, %v759
    %v950 = vmul.f32 %v761, %v761
    %v951 = vmul.f32 %v765, %v765
    %v952 = vmul.f32 %v767, %v767
    %v953 = vmul.f32 %v771, %v771
    %v954 = vmul.f32 %v773, %v773
    %v955 = vmul.f32 %v777, %v777
    %v956 = vmul.f32 %v779, %v779
    %v957 = vmul.f32 %v783, %v783
    %v958 = vmul.f32 %v785, %v785
    %v959 = vmul.f32 %v789, %v789
    %v960 = vmul.f32 %v791, %v791
    %v961 = vmul.f32 %v795, %v795
    %v962 = vmul.f32 %v797, %v797
    %v963 = vmul.f32 %v801, %v801
    %v964 = vmul.f32 %v803, %v803
    %v965 = vmul.f32 %v807, %v807
    %v966 = vmul.f32 %v809, %v809
    %v967 = vmul.f32 %v813, %v813
    %v968 = vmul.f32 %v815, %v815
    %v969 = vmul.f32 %v819, %v819
    %v970 = vmul.f32 %v821, %v821
    %v971 = vmul.f32 %v825, %v825
    %v972 = vmul.f32 %v827, %v827
    %v973 = vmul.f32 %v831, %v831
    %v974 = vmul.f32 %v833, %v833
    %v975 = vmul.f32 %v837, %v837
    %v976 = vmul.f32 %v839, %v839
    %v977 = vmul.f32 %v843, %v843
    %v978 = vmul.f32 %v845, %v845
    %v979 = vmul.f32 %v849, %v849
    %v980 = vmul.f32 %v851, %v851
    %v981 = vmul.f32 %v855, %v855
    %v982 = vmul.f32 %v857, %v857
    %v983 = vmul.f32 %v861, %v861
    %v984 = vmul.f32 %v863, %v863
    %v985 = vmul.f32 %v867, %v867
    %v986 = vmul.f32 %v869, %v869
    %v987 = vmul.f32 %v873, %v873
    %v988 = vmul.f32 %v875, %v875
    %v989 = vmul.f32 %v879, %v879
    %v990 = vmul.f32 %v881, %v881
    %v991 = vmul.f32 %v885, %v885
    %v992 = vmul.f32 %v887, %v887
    %v993 = vmul.f32 %v891, %v891
    %v994 = vmul.f32 %v893, %v893
    %v995 = vmul.f32 %v897, %v897
    %v996 = vmul.f32 %v899, %v899
    %v997 = vmul.f32 %v903, %v903
    %v998 = vmul.f32 %v905, %v905
    %v999 = vmul.f32 %v909, %v909
    %v1000 = vmul.f32 %v911, %v911
    %v1001 = vmul.f32 %v915, %v915
    %v1002 = vmul.f32 %v917, %v917
    %v1003 = vmul.f32 %v921, %v921
    %v1004 = vmul.f32 %v923, %v923
    %v1005 = vmul.f32 %v927, %v927
    %v1006 = vmul.f32 %v929, %v929
    %v1007 = vmul.f32 %v933, %v933
    %v1008 = vmul.f32 %v935, %v935
    %v1009 = vmul.f32 %v939, %v939
    %v1010 = vmul.f32 %v941, %v941
    %v1011 = vmul.f32 %v945, %v945
    %v1012 = vmul.f32 %v947, %v947
    %1013 = vst [vmem:[#allocation9] sm:$0xff] %v949
    %1014 = vst [vmem:[#allocation9 + $0x8] sm:$0xff] %v950
    %1015 = vst [vmem:[#allocation9 + $0x10] sm:$0xff] %v951
    %1016 = vst [vmem:[#allocation9 + $0x18] sm:$0xff] %v952
    %1017 = vst [vmem:[#allocation9 + $0x20] sm:$0xff] %v953
    %1018 = vst [vmem:[#allocation9 + $0x28] sm:$0xff] %v954
    %1019 = vst [vmem:[#allocation9 + $0x30] sm:$0xff] %v955
    %1020 = vst [vmem:[#allocation9 + $0x38] sm:$0xff] %v956
    %1021 = vst [vmem:[#allocation9 + $0x40] sm:$0xff] %v957
    %1022 = vst [vmem:[#allocation9 + $0x48] sm:$0xff] %v958
    %1023 = vst [vmem:[#allocation9 + $0x50] sm:$0xff] %v959
    %1024 = vst [vmem:[#allocation9 + $0x58] sm:$0xff] %v960
    %1025 = vst [vmem:[#allocation9 + $0x60] sm:$0xff] %v961
    %1026 = vst [vmem:[#allocation9 + $0x68] sm:$0xff] %v962
    %1027 = vst [vmem:[#allocation9 + $0x70] sm:$0xff] %v963
    %1028 = vst [vmem:[#allocation9 + $0x78] sm:$0xff] %v964
    %1029 = vst [vmem:[#allocation9 + $0x80] sm:$0xff] %v965
    %1030 = vst [vmem:[#allocation9 + $0x88] sm:$0xff] %v966
    %1031 = vst [vmem:[#allocation9 + $0x90] sm:$0xff] %v967
    %1032 = vst [vmem:[#allocation9 + $0x98] sm:$0xff] %v968
    %1033 = vst [vmem:[#allocation9 + $0xa0] sm:$0xff] %v969
    %1034 = vst [vmem:[#allocation9 + $0xa8] sm:$0xff] %v970
    %1035 = vst [vmem:[#allocation9 + $0xb0] sm:$0xff] %v971
    %1036 = vst [vmem:[#allocation9 + $0xb8] sm:$0xff] %v972
    %1037 = vst [vmem:[#allocation9 + $0xc0] sm:$0xff] %v973
    %1038 = vst [vmem:[#allocation9 + $0xc8] sm:$0xff] %v974
    %1039 = vst [vmem:[#allocation9 + $0xd0] sm:$0xff] %v975
    %1040 = vst [vmem:[#allocation9 + $0xd8] sm:$0xff] %v976
    %1041 = vst [vmem:[#allocation9 + $0xe0] sm:$0xff] %v977
    %1042 = vst [vmem:[#allocation9 + $0xe8] sm:$0xff] %v978
    %1043 = vst [vmem:[#allocation9 + $0xf0] sm:$0xff] %v979
    %1044 = vst [vmem:[#allocation9 + $0xf8] sm:$0xff] %v980
    %1045 = vst [vmem:[#allocation9 + $0x100] sm:$0xff] %v981
    %1046 = vst [vmem:[#allocation9 + $0x108] sm:$0xff] %v982
    %1047 = vst [vmem:[#allocation9 + $0x110] sm:$0xff] %v983
    %1048 = vst [vmem:[#allocation9 + $0x118] sm:$0xff] %v984
    %1049 = vst [vmem:[#allocation9 + $0x120] sm:$0xff] %v985
    %1050 = vst [vmem:[#allocation9 + $0x128] sm:$0xff] %v986
    %1051 = vst [vmem:[#allocation9 + $0x130] sm:$0xff] %v987
    %1052 = vst [vmem:[#allocation9 + $0x138] sm:$0xff] %v988
    %1053 = vst [vmem:[#allocation9 + $0x140] sm:$0xff] %v989
    %1054 = vst [vmem:[#allocation9 + $0x148] sm:$0xff] %v990
    %1055 = vst [vmem:[#allocation9 + $0x150] sm:$0xff] %v991
    %1056 = vst [vmem:[#allocation9 + $0x158] sm:$0xff] %v992
    %1057 = vst [vmem:[#allocation9 + $0x160] sm:$0xff] %v993
    %1058 = vst [vmem:[#allocation9 + $0x168] sm:$0xff] %v994
    %1059 = vst [vmem:[#allocation9 + $0x170] sm:$0xff] %v995
    %1060 = vst [vmem:[#allocation9 + $0x178] sm:$0xff] %v996
    %1061 = vst [vmem:[#allocation9 + $0x180] sm:$0xff] %v997
    %1062 = vst [vmem:[#allocation9 + $0x188] sm:$0xff] %v998
    %1063 = vst [vmem:[#allocation9 + $0x190] sm:$0xff] %v999
    %1064 = vst [vmem:[#allocation9 + $0x198] sm:$0xff] %v1000
    %1065 = vst [vmem:[#allocation9 + $0x1a0] sm:$0xff] %v1001
    %1066 = vst [vmem:[#allocation9 + $0x1a8] sm:$0xff] %v1002
    %1067 = vst [vmem:[#allocation9 + $0x1b0] sm:$0xff] %v1003
    %1068 = vst [vmem:[#allocation9 + $0x1b8] sm:$0xff] %v1004
    %1069 = vst [vmem:[#allocation9 + $0x1c0] sm:$0xff] %v1005
    %1070 = vst [vmem:[#allocation9 + $0x1c8] sm:$0xff] %v1006
    %1071 = vst [vmem:[#allocation9 + $0x1d0] sm:$0xff] %v1007
    %1072 = vst [vmem:[#allocation9 + $0x1d8] sm:$0xff] %v1008
    %1073 = vst [vmem:[#allocation9 + $0x1e0] sm:$0xff] %v1009
    %1074 = vst [vmem:[#allocation9 + $0x1e8] sm:$0xff] %v1010
    %1075 = vst [vmem:[#allocation9 + $0x1f0] sm:$0xff] %v1011
    %1076 = vst [vmem:[#allocation9 + $0x1f8] sm:$0xff] %v1012
    %v1077 = vld [vmem:[#allocation9] sm:$0xff]
    %v1078 = vld [vmem:[#allocation9 + $0x8] sm:$0xff]
    %v1079 = vld [vmem:[#allocation9 + $0x10] sm:$0xff]
    %v1080 = vld [vmem:[#allocation9 + $0x18] sm:$0xff]
    %v1081 = vld [vmem:[#allocation9 + $0x20] sm:$0xff]
    %v1082 = vld [vmem:[#allocation9 + $0x28] sm:$0xff]
    %v1083 = vld [vmem:[#allocation9 + $0x30] sm:$0xff]
    %v1084 = vld [vmem:[#allocation9 + $0x38] sm:$0xff]
    %v1085 = vld [vmem:[#allocation9 + $0x40] sm:$0xff]
    %v1086 = vld [vmem:[#allocation9 + $0x48] sm:$0xff]
    %v1087 = vld [vmem:[#allocation9 + $0x50] sm:$0xff]
    %v1088 = vld [vmem:[#allocation9 + $0x58] sm:$0xff]
    %v1089 = vld [vmem:[#allocation9 + $0x60] sm:$0xff]
    %v1090 = vld [vmem:[#allocation9 + $0x68] sm:$0xff]
    %v1091 = vld [vmem:[#allocation9 + $0x70] sm:$0xff]
    %v1092 = vld [vmem:[#allocation9 + $0x78] sm:$0xff]
    %v1093 = vld [vmem:[#allocation9 + $0x80] sm:$0xff]
    %v1094 = vld [vmem:[#allocation9 + $0x88] sm:$0xff]
    %v1095 = vld [vmem:[#allocation9 + $0x90] sm:$0xff]
    %v1096 = vld [vmem:[#allocation9 + $0x98] sm:$0xff]
    %v1097 = vld [vmem:[#allocation9 + $0xa0] sm:$0xff]
    %v1098 = vld [vmem:[#allocation9 + $0xa8] sm:$0xff]
    %v1099 = vld [vmem:[#allocation9 + $0xb0] sm:$0xff]
    %v1100 = vld [vmem:[#allocation9 + $0xb8] sm:$0xff]
    %v1101 = vld [vmem:[#allocation9 + $0xc0] sm:$0xff]
    %v1102 = vld [vmem:[#allocation9 + $0xc8] sm:$0xff]
    %v1103 = vld [vmem:[#allocation9 + $0xd0] sm:$0xff]
    %v1104 = vld [vmem:[#allocation9 + $0xd8] sm:$0xff]
    %v1105 = vld [vmem:[#allocation9 + $0xe0] sm:$0xff]
    %v1106 = vld [vmem:[#allocation9 + $0xe8] sm:$0xff]
    %v1107 = vld [vmem:[#allocation9 + $0xf0] sm:$0xff]
    %v1108 = vld [vmem:[#allocation9 + $0xf8] sm:$0xff]
    %v1109 = vld [vmem:[#allocation9 + $0x100] sm:$0xff]
    %v1110 = vld [vmem:[#allocation9 + $0x108] sm:$0xff]
    %v1111 = vld [vmem:[#allocation9 + $0x110] sm:$0xff]
    %v1112 = vld [vmem:[#allocation9 + $0x118] sm:$0xff]
    %v1113 = vld [vmem:[#allocation9 + $0x120] sm:$0xff]
    %v1114 = vld [vmem:[#allocation9 + $0x128] sm:$0xff]
    %v1115 = vld [vmem:[#allocation9 + $0x130] sm:$0xff]
    %v1116 = vld [vmem:[#allocation9 + $0x138] sm:$0xff]
    %v1117 = vld [vmem:[#allocation9 + $0x140] sm:$0xff]
    %v1118 = vld [vmem:[#allocation9 + $0x148] sm:$0xff]
    %v1119 = vld [vmem:[#allocation9 + $0x150] sm:$0xff]
    %v1120 = vld [vmem:[#allocation9 + $0x158] sm:$0xff]
    %v1121 = vld [vmem:[#allocation9 + $0x160] sm:$0xff]
    %v1122 = vld [vmem:[#allocation9 + $0x168] sm:$0xff]
    %v1123 = vld [vmem:[#allocation9 + $0x170] sm:$0xff]
    %v1124 = vld [vmem:[#allocation9 + $0x178] sm:$0xff]
    %v1125 = vld [vmem:[#allocation9 + $0x180] sm:$0xff]
    %v1126 = vld [vmem:[#allocation9 + $0x188] sm:$0xff]
    %v1127 = vld [vmem:[#allocation9 + $0x190] sm:$0xff]
    %v1128 = vld [vmem:[#allocation9 + $0x198] sm:$0xff]
    %v1129 = vld [vmem:[#allocation9 + $0x1a0] sm:$0xff]
    %v1130 = vld [vmem:[#allocation9 + $0x1a8] sm:$0xff]
    %v1131 = vld [vmem:[#allocation9 + $0x1b0] sm:$0xff]
    %v1132 = vld [vmem:[#allocation9 + $0x1b8] sm:$0xff]
    %v1133 = vld [vmem:[#allocation9 + $0x1c0] sm:$0xff]
    %v1134 = vld [vmem:[#allocation9 + $0x1c8] sm:$0xff]
    %v1135 = vld [vmem:[#allocation9 + $0x1d0] sm:$0xff]
    %v1136 = vld [vmem:[#allocation9 + $0x1d8] sm:$0xff]
    %v1137 = vld [vmem:[#allocation9 + $0x1e0] sm:$0xff]
    %v1138 = vld [vmem:[#allocation9 + $0x1e8] sm:$0xff]
    %v1139 = vld [vmem:[#allocation9 + $0x1f0] sm:$0xff]
    %v1140 = vld [vmem:[#allocation9 + $0x1f8] sm:$0xff]
    %v1141 = vadd.f32 %v1077, %v1078
    %1142 = vadd.xlane.f32.xlu0 %v1141
    %v1143 = vpop.xlane.xlu0 %1142
    %v1144 = vadd.f32 %v1079, %v1080
    %1145 = vadd.xlane.f32.xlu0 %v1144
    %v1146 = vpop.xlane.xlu0 %1145
    %v1147 = vadd.f32 %v1081, %v1082
    %1148 = vadd.xlane.f32.xlu0 %v1147
    %v1149 = vpop.xlane.xlu0 %1148
    %v1150 = vadd.f32 %v1083, %v1084
    %1151 = vadd.xlane.f32.xlu0 %v1150
    %v1152 = vpop.xlane.xlu0 %1151
    %v1153 = vadd.f32 %v1085, %v1086
    %1154 = vadd.xlane.f32.xlu0 %v1153
    %v1155 = vpop.xlane.xlu0 %1154
    %v1156 = vadd.f32 %v1087, %v1088
    %1157 = vadd.xlane.f32.xlu0 %v1156
    %v1158 = vpop.xlane.xlu0 %1157
    %v1159 = vadd.f32 %v1089, %v1090
    %1160 = vadd.xlane.f32.xlu0 %v1159
    %v1161 = vpop.xlane.xlu0 %1160
    %v1162 = vadd.f32 %v1091, %v1092
    %1163 = vadd.xlane.f32.xlu0 %v1162
    %v1164 = vpop.xlane.xlu0 %1163
    %v1165 = vadd.f32 %v1093, %v1094
    %1166 = vadd.xlane.f32.xlu0 %v1165
    %v1167 = vpop.xlane.xlu0 %1166
    %v1168 = vadd.f32 %v1095, %v1096
    %1169 = vadd.xlane.f32.xlu0 %v1168
    %v1170 = vpop.xlane.xlu0 %1169
    %v1171 = vadd.f32 %v1097, %v1098
    %1172 = vadd.xlane.f32.xlu0 %v1171
    %v1173 = vpop.xlane.xlu0 %1172
    %v1174 = vadd.f32 %v1099, %v1100
    %1175 = vadd.xlane.f32.xlu0 %v1174
    %v1176 = vpop.xlane.xlu0 %1175
    %v1177 = vadd.f32 %v1101, %v1102
    %1178 = vadd.xlane.f32.xlu0 %v1177
    %v1179 = vpop.xlane.xlu0 %1178
    %v1180 = vadd.f32 %v1103, %v1104
    %1181 = vadd.xlane.f32.xlu0 %v1180
    %v1182 = vpop.xlane.xlu0 %1181
    %v1183 = vadd.f32 %v1105, %v1106
    %1184 = vadd.xlane.f32.xlu0 %v1183
    %v1185 = vpop.xlane.xlu0 %1184
    %v1186 = vadd.f32 %v1107, %v1108
    %1187 = vadd.xlane.f32.xlu0 %v1186
    %v1188 = vpop.xlane.xlu0 %1187
    %v1189 = vadd.f32 %v1109, %v1110
    %1190 = vadd.xlane.f32.xlu0 %v1189
    %v1191 = vpop.xlane.xlu0 %1190
    %v1192 = vadd.f32 %v1111, %v1112
    %1193 = vadd.xlane.f32.xlu0 %v1192
    %v1194 = vpop.xlane.xlu0 %1193
    %v1195 = vadd.f32 %v1113, %v1114
    %1196 = vadd.xlane.f32.xlu0 %v1195
    %v1197 = vpop.xlane.xlu0 %1196
    %v1198 = vadd.f32 %v1115, %v1116
    %1199 = vadd.xlane.f32.xlu0 %v1198
    %v1200 = vpop.xlane.xlu0 %1199
    %v1201 = vadd.f32 %v1117, %v1118
    %1202 = vadd.xlane.f32.xlu0 %v1201
    %v1203 = vpop.xlane.xlu0 %1202
    %v1204 = vadd.f32 %v1119, %v1120
    %1205 = vadd.xlane.f32.xlu0 %v1204
    %v1206 = vpop.xlane.xlu0 %1205
    %v1207 = vadd.f32 %v1121, %v1122
    %1208 = vadd.xlane.f32.xlu0 %v1207
    %v1209 = vpop.xlane.xlu0 %1208
    %v1210 = vadd.f32 %v1123, %v1124
    %1211 = vadd.xlane.f32.xlu0 %v1210
    %v1212 = vpop.xlane.xlu0 %1211
    %v1213 = vadd.f32 %v1125, %v1126
    %1214 = vadd.xlane.f32.xlu0 %v1213
    %v1215 = vpop.xlane.xlu0 %1214
    %v1216 = vadd.f32 %v1127, %v1128
    %1217 = vadd.xlane.f32.xlu0 %v1216
    %v1218 = vpop.xlane.xlu0 %1217
    %v1219 = vadd.f32 %v1129, %v1130
    %1220 = vadd.xlane.f32.xlu0 %v1219
    %v1221 = vpop.xlane.xlu0 %1220
    %v1222 = vadd.f32 %v1131, %v1132
    %1223 = vadd.xlane.f32.xlu0 %v1222
    %v1224 = vpop.xlane.xlu0 %1223
    %v1225 = vadd.f32 %v1133, %v1134
    %1226 = vadd.xlane.f32.xlu0 %v1225
    %v1227 = vpop.xlane.xlu0 %1226
    %v1228 = vadd.f32 %v1135, %v1136
    %1229 = vadd.xlane.f32.xlu0 %v1228
    %v1230 = vpop.xlane.xlu0 %1229
    %v1231 = vadd.f32 %v1137, %v1138
    %1232 = vadd.xlane.f32.xlu0 %v1231
    %v1233 = vpop.xlane.xlu0 %1232
    %v1234 = vadd.f32 %v1139, %v1140
    %1235 = vadd.xlane.f32.xlu0 %v1234
    %v1236 = vpop.xlane.xlu0 %1235
    %v1237 = vmax.f32 %v1143, 1e-12
    %v1238 = vmax.f32 %v1146, 1e-12
    %v1239 = vmax.f32 %v1149, 1e-12
    %v1240 = vmax.f32 %v1152, 1e-12
    %v1241 = vmax.f32 %v1155, 1e-12
    %v1242 = vmax.f32 %v1158, 1e-12
    %v1243 = vmax.f32 %v1161, 1e-12
    %v1244 = vmax.f32 %v1164, 1e-12
    %v1245 = vmax.f32 %v1167, 1e-12
    %v1246 = vmax.f32 %v1170, 1e-12
    %v1247 = vmax.f32 %v1173, 1e-12
    %v1248 = vmax.f32 %v1176, 1e-12
    %v1249 = vmax.f32 %v1179, 1e-12
    %v1250 = vmax.f32 %v1182, 1e-12
    %v1251 = vmax.f32 %v1185, 1e-12
    %v1252 = vmax.f32 %v1188, 1e-12
    %v1253 = vmax.f32 %v1191, 1e-12
    %v1254 = vmax.f32 %v1194, 1e-12
    %v1255 = vmax.f32 %v1197, 1e-12
    %v1256 = vmax.f32 %v1200, 1e-12
    %v1257 = vmax.f32 %v1203, 1e-12
    %v1258 = vmax.f32 %v1206, 1e-12
    %v1259 = vmax.f32 %v1209, 1e-12
    %v1260 = vmax.f32 %v1212, 1e-12
    %v1261 = vmax.f32 %v1215, 1e-12
    %v1262 = vmax.f32 %v1218, 1e-12
    %v1263 = vmax.f32 %v1221, 1e-12
    %v1264 = vmax.f32 %v1224, 1e-12
    %v1265 = vmax.f32 %v1227, 1e-12
    %v1266 = vmax.f32 %v1230, 1e-12
    %v1267 = vmax.f32 %v1233, 1e-12
    %v1268 = vmax.f32 %v1236, 1e-12
    %v1269 = vrcp.pop %v1237
    %v1270 = vrcp.pop %v1238
    %v1271 = vrcp.pop %v1239
    %v1272 = vrcp.pop %v1240
    %v1273 = vrcp.pop %v1241
    %v1274 = vrcp.pop %v1242
    %v1275 = vrcp.pop %v1243
    %v1276 = vrcp.pop %v1244
    %v1277 = vrcp.pop %v1245
    %v1278 = vrcp.pop %v1246
    %v1279 = vrcp.pop %v1247
    %v1280 = vrcp.pop %v1248
    %v1281 = vrcp.pop %v1249
    %v1282 = vrcp.pop %v1250
    %v1283 = vrcp.pop %v1251
    %v1284 = vrcp.pop %v1252
    %v1285 = vrcp.pop %v1253
    %v1286 = vrcp.pop %v1254
    %v1287 = vrcp.pop %v1255
    %v1288 = vrcp.pop %v1256
    %v1289 = vrcp.pop %v1257
    %v1290 = vrcp.pop %v1258
    %v1291 = vrcp.pop %v1259
    %v1292 = vrcp.pop %v1260
    %v1293 = vrcp.pop %v1261
    %v1294 = vrcp.pop %v1262
    %v1295 = vrcp.pop %v1263
    %v1296 = vrcp.pop %v1264
    %v1297 = vrcp.pop %v1265
    %v1298 = vrcp.pop %v1266
    %v1299 = vrcp.pop %v1267
    %v1300 = vrcp.pop %v1268
    %v1301 = vmul.f32 %v1077, %v1269
    %v1302 = vmul.f32 %v1078, %v1269
    %v1303 = vmul.f32 %v1079, %v1270
    %v1304 = vmul.f32 %v1080, %v1270
    %v1305 = vmul.f32 %v1081, %v1271
    %v1306 = vmul.f32 %v1082, %v1271
    %v1307 = vmul.f32 %v1083, %v1272
    %v1308 = vmul.f32 %v1084, %v1272
    %v1309 = vmul.f32 %v1085, %v1273
    %v1310 = vmul.f32 %v1086, %v1273
    %v1311 = vmul.f32 %v1087, %v1274
    %v1312 = vmul.f32 %v1088, %v1274
    %v1313 = vmul.f32 %v1089, %v1275
    %v1314 = vmul.f32 %v1090, %v1275
    %v1315 = vmul.f32 %v1091, %v1276
    %v1316 = vmul.f32 %v1092, %v1276
    %v1317 = vmul.f32 %v1093, %v1277
    %v1318 = vmul.f32 %v1094, %v1277
    %v1319 = vmul.f32 %v1095, %v1278
    %v1320 = vmul.f32 %v1096, %v1278
    %v1321 = vmul.f32 %v1097, %v1279
    %v1322 = vmul.f32 %v1098, %v1279
    %v1323 = vmul.f32 %v1099, %v1280
    %v1324 = vmul.f32 %v1100, %v1280
    %v1325 = vmul.f32 %v1101, %v1281
    %v1326 = vmul.f32 %v1102, %v1281
    %v1327 = vmul.f32 %v1103, %v1282
    %v1328 = vmul.f32 %v1104, %v1282
    %v1329 = vmul.f32 %v1105, %v1283
    %v1330 = vmul.f32 %v1106, %v1283
    %v1331 = vmul.f32 %v1107, %v1284
    %v1332 = vmul.f32 %v1108, %v1284
    %v1333 = vmul.f32 %v1109, %v1285
    %v1334 = vmul.f32 %v1110, %v1285
    %v1335 = vmul.f32 %v1111, %v1286
    %v1336 = vmul.f32 %v1112, %v1286
    %v1337 = vmul.f32 %v1113, %v1287
    %v1338 = vmul.f32 %v1114, %v1287
    %v1339 = vmul.f32 %v1115, %v1288
    %v1340 = vmul.f32 %v1116, %v1288
    %v1341 = vmul.f32 %v1117, %v1289
    %v1342 = vmul.f32 %v1118, %v1289
    %v1343 = vmul.f32 %v1119, %v1290
    %v1344 = vmul.f32 %v1120, %v1290
    %v1345 = vmul.f32 %v1121, %v1291
    %v1346 = vmul.f32 %v1122, %v1291
    %v1347 = vmul.f32 %v1123, %v1292
    %v1348 = vmul.f32 %v1124, %v1292
    %v1349 = vmul.f32 %v1125, %v1293
    %v1350 = vmul.f32 %v1126, %v1293
    %v1351 = vmul.f32 %v1127, %v1294
    %v1352 = vmul.f32 %v1128, %v1294
    %v1353 = vmul.f32 %v1129, %v1295
    %v1354 = vmul.f32 %v1130, %v1295
    %v1355 = vmul.f32 %v1131, %v1296
    %v1356 = vmul.f32 %v1132, %v1296
    %v1357 = vmul.f32 %v1133, %v1297
    %v1358 = vmul.f32 %v1134, %v1297
    %v1359 = vmul.f32 %v1135, %v1298
    %v1360 = vmul.f32 %v1136, %v1298
    %v1361 = vmul.f32 %v1137, %v1299
    %v1362 = vmul.f32 %v1138, %v1299
    %v1363 = vmul.f32 %v1139, %v1300
    %v1364 = vmul.f32 %v1140, %v1300
    %1365 = vst [vmem:[#allocation9] sm:$0xff] %v1301
    %1366 = vst [vmem:[#allocation9 + $0x8] sm:$0xff] %v1302
    %1367 = vst [vmem:[#allocation9 + $0x10] sm:$0xff] %v1303
    %1368 = vst [vmem:[#allocation9 + $0x18] sm:$0xff] %v1304
    %1369 = vst [vmem:[#allocation9 + $0x20] sm:$0xff] %v1305
    %1370 = vst [vmem:[#allocation9 + $0x28] sm:$0xff] %v1306
    %1371 = vst [vmem:[#allocation9 + $0x30] sm:$0xff] %v1307
    %1372 = vst [vmem:[#allocation9 + $0x38] sm:$0xff] %v1308
    %1373 = vst [vmem:[#allocation9 + $0x40] sm:$0xff] %v1309
    %1374 = vst [vmem:[#allocation9 + $0x48] sm:$0xff] %v1310
    %1375 = vst [vmem:[#allocation9 + $0x50] sm:$0xff] %v1311
    %1376 = vst [vmem:[#allocation9 + $0x58] sm:$0xff] %v1312
    %1377 = vst [vmem:[#allocation9 + $0x60] sm:$0xff] %v1313
    %1378 = vst [vmem:[#allocation9 + $0x68] sm:$0xff] %v1314
    %1379 = vst [vmem:[#allocation9 + $0x70] sm:$0xff] %v1315
    %1380 = vst [vmem:[#allocation9 + $0x78] sm:$0xff] %v1316
    %1381 = vst [vmem:[#allocation9 + $0x80] sm:$0xff] %v1317
    %1382 = vst [vmem:[#allocation9 + $0x88] sm:$0xff] %v1318
    %1383 = vst [vmem:[#allocation9 + $0x90] sm:$0xff] %v1319
    %1384 = vst [vmem:[#allocation9 + $0x98] sm:$0xff] %v1320
    %1385 = vst [vmem:[#allocation9 + $0xa0] sm:$0xff] %v1321
    %1386 = vst [vmem:[#allocation9 + $0xa8] sm:$0xff] %v1322
    %1387 = vst [vmem:[#allocation9 + $0xb0] sm:$0xff] %v1323
    %1388 = vst [vmem:[#allocation9 + $0xb8] sm:$0xff] %v1324
    %1389 = vst [vmem:[#allocation9 + $0xc0] sm:$0xff] %v1325
    %1390 = vst [vmem:[#allocation9 + $0xc8] sm:$0xff] %v1326
    %1391 = vst [vmem:[#allocation9 + $0xd0] sm:$0xff] %v1327
    %1392 = vst [vmem:[#allocation9 + $0xd8] sm:$0xff] %v1328
    %1393 = vst [vmem:[#allocation9 + $0xe0] sm:$0xff] %v1329
    %1394 = vst [vmem:[#allocation9 + $0xe8] sm:$0xff] %v1330
    %1395 = vst [vmem:[#allocation9 + $0xf0] sm:$0xff] %v1331
    %1396 = vst [vmem:[#allocation9 + $0xf8] sm:$0xff] %v1332
    %1397 = vst [vmem:[#allocation9 + $0x100] sm:$0xff] %v1333
    %1398 = vst [vmem:[#allocation9 + $0x108] sm:$0xff] %v1334
    %1399 = vst [vmem:[#allocation9 + $0x110] sm:$0xff] %v1335
    %1400 = vst [vmem:[#allocation9 + $0x118] sm:$0xff] %v1336
    %1401 = vst [vmem:[#allocation9 + $0x120] sm:$0xff] %v1337
    %1402 = vst [vmem:[#allocation9 + $0x128] sm:$0xff] %v1338
    %1403 = vst [vmem:[#allocation9 + $0x130] sm:$0xff] %v1339
    %1404 = vst [vmem:[#allocation9 + $0x138] sm:$0xff] %v1340
    %1405 = vst [vmem:[#allocation9 + $0x140] sm:$0xff] %v1341
    %1406 = vst [vmem:[#allocation9 + $0x148] sm:$0xff] %v1342
    %1407 = vst [vmem:[#allocation9 + $0x150] sm:$0xff] %v1343
    %1408 = vst [vmem:[#allocation9 + $0x158] sm:$0xff] %v1344
    %1409 = vst [vmem:[#allocation9 + $0x160] sm:$0xff] %v1345
    %1410 = vst [vmem:[#allocation9 + $0x168] sm:$0xff] %v1346
    %1411 = vst [vmem:[#allocation9 + $0x170] sm:$0xff] %v1347
    %1412 = vst [vmem:[#allocation9 + $0x178] sm:$0xff] %v1348
    %1413 = vst [vmem:[#allocation9 + $0x180] sm:$0xff] %v1349
    %1414 = vst [vmem:[#allocation9 + $0x188] sm:$0xff] %v1350
    %1415 = vst [vmem:[#allocation9 + $0x190] sm:$0xff] %v1351
    %1416 = vst [vmem:[#allocation9 + $0x198] sm:$0xff] %v1352
    %1417 = vst [vmem:[#allocation9 + $0x1a0] sm:$0xff] %v1353
    %1418 = vst [vmem:[#allocation9 + $0x1a8] sm:$0xff] %v1354
    %1419 = vst [vmem:[#allocation9 + $0x1b0] sm:$0xff] %v1355
    %1420 = vst [vmem:[#allocation9 + $0x1b8] sm:$0xff] %v1356
    %1421 = vst [vmem:[#allocation9 + $0x1c0] sm:$0xff] %v1357
    %1422 = vst [vmem:[#allocation9 + $0x1c8] sm:$0xff] %v1358
    %1423 = vst [vmem:[#allocation9 + $0x1d0] sm:$0xff] %v1359
    %1424 = vst [vmem:[#allocation9 + $0x1d8] sm:$0xff] %v1360
    %1425 = vst [vmem:[#allocation9 + $0x1e0] sm:$0xff] %v1361
    %1426 = vst [vmem:[#allocation9 + $0x1e8] sm:$0xff] %v1362
    %1427 = vst [vmem:[#allocation9 + $0x1f0] sm:$0xff] %v1363
    %1428 = vst [vmem:[#allocation9 + $0x1f8] sm:$0xff] %v1364
    // Predicated region
    $region38: #{tpu_custom_call.1} parent=1 // pred_check
      _
    $region39: #{tpu_custom_call.1} parent=1 // pred_check_branch
      %1430 = sbr.rel (0) target = $region41
    $region40: #{tpu_custom_call.1} parent=1 // pred_region
      %s1432 = ssub.s32 8192, 8192
      %1433 = vsyncadd [#allocation5], %s1432
      %s1434 = sshll.u32 [#allocation9], 4
      %s1435 = int_to_ptr.vmem [resolvable:$true] %s1434
      %1440 = dma.vmem_to_hbm [thread:$0]  %s1435, 8192, %s5, [#allocation5], 256, 256, 16
    $region41: #{tpu_custom_call.1} parent=1 // pred_fallthru
      _
    // Predicated region
    $region42: #{tpu_custom_call.1} parent=1 // pred_check
      _
    $region43: #{tpu_custom_call.1} parent=1 // pred_check_branch
      %1442 = sbr.rel (0) target = $region45
    $region44: #{tpu_custom_call.1} parent=1 // pred_region
      %1443 = dma.done [#allocation5], 8192
    $region45: #{tpu_custom_call.1} parent=1 // pred_fallthru
      _
    %1444 = vsyncpa [#allocation4], 1
    %1445 = vsyncpa [#allocation7], 1
    %1446 = vsyncpa [#allocation5], 1

</llo_original>
